<compile_context>
chip_gen: v7x
topology: tpu7x:2x2x1
jax: 0.10.0
libtpu: 0.0.40
codegen_flags: <defaults>
</compile_context>

<pallas_src>
import functools

import jax
import jax.numpy as jnp
from jax import lax
from jax.experimental import pallas as pl
from jax.experimental.pallas import tpu as pltpu


# ------------------------------ Pallas kernel -------------------------------

def _fused_mha_kernel(xq_ref, xk_ref, xv_ref,
                      wq_ref, wk_ref, wv_ref,
                      bq_ref, bk_ref, bv_ref,
                      wo_ref, bo_ref,
                      out_ref, attn_ref,
                      ctx_ref,
                      *, bps, L, S, n_heads, d_keys, d_values):
    # Wide projections, once per grid step over all bps batches:
    #   (bps*L, D) @ (D, H*dk) on the MXU, f32 accumulation, bias added once.
    # (The softmax scale is pre-folded into wq/bq on the host.)
    q = jnp.dot(xq_ref[...], wq_ref[...],
                preferred_element_type=jnp.float32) + bq_ref[...]
    k = jnp.dot(xk_ref[...], wk_ref[...],
                preferred_element_type=jnp.float32) + bk_ref[...]
    v = jnp.dot(xv_ref[...], wv_ref[...],
                preferred_element_type=jnp.float32) + bv_ref[...]

    for bi in range(bps):                 # static unroll; bps * n_heads small
        for h in range(n_heads):
            qh = q[bi * L:(bi + 1) * L, h * d_keys:(h + 1) * d_keys]
            kh = k[bi * S:(bi + 1) * S, h * d_keys:(h + 1) * d_keys]
            vh = v[bi * S:(bi + 1) * S, h * d_values:(h + 1) * d_values]

            # scores = (q * scale) @ k^T without a materialized transpose
            dots = lax.dot_general(qh, kh, (((1,), (1,)), ((), ())),
                                   preferred_element_type=jnp.float32)
            m = jnp.max(dots, axis=-1, keepdims=True)
            e = jnp.exp(dots - m)
            attn = e * pl.reciprocal(jnp.sum(e, axis=-1, keepdims=True),
                                     approx=True)        # EUP slot, ~free
            attn_ref[bi, h] = attn.astype(attn_ref.dtype)  # bf16 writeback

            ctx = jnp.dot(attn, vh, preferred_element_type=jnp.float32)
            ctx_ref[bi * L:(bi + 1) * L,
                    h * d_values:(h + 1) * d_values] = ctx.astype(ctx_ref.dtype)

    # Fused output projection: ONE (bps*L, H*dv) @ (H*dv, D) MXU matmul.
    out = jnp.dot(ctx_ref[...], wo_ref[...],
                  preferred_element_type=jnp.float32) + bo_ref[...]
    out_ref[...] = out.astype(out_ref.dtype)


# ------------------------------ Param prep ----------------------------------

def prepare_kernel_params(params, n_heads, compute_dtype=jnp.bfloat16):
    """One-time host-side prep: transpose weights to [in, out], fold the
    softmax scale into Wq/bq, reshape biases, cast weights to bf16.
    Done once (not per forward call) so the steady-state step has no glue."""
    H = n_heads
    d_keys = params["wq"].shape[0] // H
    d_values = params["wv"].shape[0] // H
    scale = float(d_keys) ** (-0.5)
    return dict(
        wq=(params["wq"].T * scale).astype(compute_dtype),   # (D, H*dk), scaled
        wk=params["wk"].T.astype(compute_dtype),             # (D, H*dk)
        wv=params["wv"].T.astype(compute_dtype),             # (D, H*dv)
        wo=params["wo"].T.astype(compute_dtype),             # (H*dv, D)
        bq=(params["bq"] * scale).reshape(1, -1).astype(jnp.float32),
        bk=params["bk"].reshape(1, -1).astype(jnp.float32),
        bv=params["bv"].reshape(1, -1).astype(jnp.float32),
        bo=params["bo"].reshape(1, -1).astype(jnp.float32),
        n_heads=H, d_keys=d_keys, d_values=d_values,
    )


def _pick_batches_per_step(B, L, S):
    # >=2 grid steps keep both v7x TensorCores busy (grid axis is "parallel");
    # fatter steps amortize the ~0.35us fixed cost per grid step on single-TC
    # v5e/v6e and raise MXU row occupancy of the wide projections.
    if (L % 8) or (S % 8):
        # TODO(synk): ragged L/S -> fall back to whole-array blocks so the
        # (8,128) block-shape rule trivially holds.
        return B
    if B < 2:
        return 1
    for bps in range(B // 2, 0, -1):
        if B % bps == 0:
            return bps
    return 1


# ------------------------------ Python wrapper ------------------------------

def channel_autocorrelation_layer(queries, keys, values, kparams,
                                  compute_dtype=jnp.bfloat16,
                                  attn_dtype=jnp.bfloat16):
    """Forward pass of channel_AutoCorrelationLayer (3-D batched branch).

    queries: [B, L, d_model]; keys/values: [B, S, d_model].
    Returns (out [B, L, d_model] f32, attn [B, H, L, S] attn_dtype).
    """
    B, L, D = queries.shape
    _, S, _ = keys.shape
    H = kparams["n_heads"]
    dk = kparams["d_keys"]
    dv = kparams["d_values"]

    bps = _pick_batches_per_step(B, L, S)
    n_steps = B // bps

    # Flatten the batch into the row (sublane) axis on the host (cheap,
    # contiguous reshape) so the kernel's projections run over bps*L rows at
    # once; cast to bf16 at the boundary to halve HBM->VMEM DMA bytes.
    xq = queries.reshape(B * L, D).astype(compute_dtype)
    xk = keys.reshape(B * S, D).astype(compute_dtype)
    xv = values.reshape(B * S, D).astype(compute_dtype)

    kernel = functools.partial(
        _fused_mha_kernel, bps=bps, L=L, S=S,
        n_heads=H, d_keys=dk, d_values=dv)

    out2d, attn = pl.pallas_call(
        kernel,
        grid=(n_steps,),
        in_specs=[
            pl.BlockSpec((bps * L, D), lambda i: (i, 0)),        # queries
            pl.BlockSpec((bps * S, D), lambda i: (i, 0)),        # keys
            pl.BlockSpec((bps * S, D), lambda i: (i, 0)),        # values
            pl.BlockSpec((D, H * dk), lambda i: (0, 0)),         # Wq^T * scale
            pl.BlockSpec((D, H * dk), lambda i: (0, 0)),         # Wk^T
            pl.BlockSpec((D, H * dv), lambda i: (0, 0)),         # Wv^T
            pl.BlockSpec((1, H * dk), lambda i: (0, 0)),         # bq * scale
            pl.BlockSpec((1, H * dk), lambda i: (0, 0)),         # bk
            pl.BlockSpec((1, H * dv), lambda i: (0, 0)),         # bv
            pl.BlockSpec((H * dv, D), lambda i: (0, 0)),         # Wo^T
            pl.BlockSpec((1, D), lambda i: (0, 0)),              # bo
        ],
        out_specs=[
            pl.BlockSpec((bps * L, D), lambda i: (i, 0)),            # out
            pl.BlockSpec((bps, H, L, S), lambda i: (i, 0, 0, 0)),    # attn
        ],
        out_shape=[
            jax.ShapeDtypeStruct((B * L, D), jnp.float32),
            jax.ShapeDtypeStruct((B, H, L, S), attn_dtype),
        ],
        scratch_shapes=[pltpu.VMEM((bps * L, H * dv), jnp.bfloat16)],
        compiler_params=pltpu.CompilerParams(
            dimension_semantics=("parallel",)),
    )(xq, xk, xv,
      kparams["wq"], kparams["wk"], kparams["wv"],
      kparams["bq"], kparams["bk"], kparams["bv"],
      kparams["wo"], kparams["bo"])

    return out2d.reshape(B, L, D), attn


# ------------------------------ Param setup ---------------------------------

def init_params(key, d_model, n_heads):
    d_keys = d_model // n_heads
    d_values = d_model // n_heads
    ks = jax.random.split(key, 8)

    def lin(kw, kb, out_f, in_f):
        bound = 1.0 / jnp.sqrt(in_f)
        v = jax.random.uniform(kw, (out_f, in_f), jnp.float32, -bound, bound)
        b = jax.random.uniform(kb, (out_f,), jnp.float32, -bound, bound)
        # weight_norm reparametrization; at init g = ||v|| per output row,
        # so the effective weight equals v exactly.
        g = jnp.linalg.norm(v, axis=1, keepdims=True)
        w = g * v / jnp.linalg.norm(v, axis=1, keepdims=True)
        return w, b

    wq, bq = lin(ks[0], ks[1], d_keys * n_heads, d_model)
    wk, bk = lin(ks[2], ks[3], d_keys * n_heads, d_model)
    wv, bv = lin(ks[4], ks[5], d_values * n_heads, d_model)
    wo, bo = lin(ks[6], ks[7], d_model, d_values * n_heads)
    return dict(wq=wq, bq=bq, wk=wk, bk=bk, wv=wv, bv=bv, wo=wo, bo=bo)


# ------------------------------ Reference (jnp) ------------------------------

def reference(queries, keys, values, p, n_heads):
    B, L, D = queries.shape
    _, S, _ = keys.shape
    H = n_heads
    dk = p["wq"].shape[0] // H
    q = (queries @ p["wq"].T + p["bq"]).reshape(B, L, H, -1).transpose(0, 2, 1, 3)
    k = (keys @ p["wk"].T + p["bk"]).reshape(B, S, H, -1).transpose(0, 2, 1, 3)
    v = (values @ p["wv"].T + p["bv"]).reshape(B, S, H, -1).transpose(0, 2, 1, 3)
    dots = jnp.einsum("bhld,bhsd->bhls", q, k) * (dk ** -0.5)
    attn = jax.nn.softmax(dots, axis=-1)
    out = jnp.einsum("bhls,bhsd->bhld", attn, v)
    out = out.transpose(0, 2, 1, 3).reshape(B, L, -1)
    out = out @ p["wo"].T + p["bo"]
    return out, attn


# ---------------------------------- Main -------------------------------------

if __name__ == "__main__":
    d_model, n_heads = 32, 4
    B, L, S = 4, 8, 8

    key = jax.random.PRNGKey(0)
    kp, kq, kk, kv = jax.random.split(key, 4)
    params = init_params(kp, d_model, n_heads)
    kparams = prepare_kernel_params(params, n_heads)   # one-time host prep

    queries = jax.random.normal(kq, (B, L, d_model), jnp.float32)
    keys = jax.random.normal(kk, (B, S, d_model), jnp.float32)
    values = jax.random.normal(kv, (B, S, d_model), jnp.float32)

    out, attn = channel_autocorrelation_layer(queries, keys, values, kparams)
    out = jax.block_until_ready(out)
    attn = jax.block_until_ready(attn)

    ref_out, ref_attn = reference(queries, keys, values, params, n_heads)
    assert out.shape == (B, L, d_model) and attn.shape == (B, n_heads, L, S)

    # Tolerances cover bf16 operands/weights, the bf16 attention-map export,
    # the EUP approximate reciprocal in the softmax, and default (bf16-operand)
    # MXU precision in both kernel and reference.
    attn_f32 = attn.astype(jnp.float32)
    assert jnp.allclose(out, ref_out, atol=1e-2, rtol=1e-2), \
        f"out max err {jnp.max(jnp.abs(out - ref_out))}"
    assert jnp.allclose(attn_f32, ref_attn, atol=1e-2, rtol=1e-2), \
        f"attn max err {jnp.max(jnp.abs(attn_f32 - ref_attn))}"

    print("KERNEL_OK")
</pallas_src>

<mosaic_0001>
module attributes {stable_mosaic.version = 11 : i64} {
  func.func @_fused_mha_kernel(%arg0: i32, %arg1: memref<16x32xbf16, #tpu.memory_space<vmem>>, %arg2: memref<16x32xbf16, #tpu.memory_space<vmem>>, %arg3: memref<16x32xbf16, #tpu.memory_space<vmem>>, %arg4: memref<32x32xbf16, #tpu.memory_space<vmem>>, %arg5: memref<32x32xbf16, #tpu.memory_space<vmem>>, %arg6: memref<32x32xbf16, #tpu.memory_space<vmem>>, %arg7: memref<1x32xf32, #tpu.memory_space<vmem>>, %arg8: memref<1x32xf32, #tpu.memory_space<vmem>>, %arg9: memref<1x32xf32, #tpu.memory_space<vmem>>, %arg10: memref<32x32xbf16, #tpu.memory_space<vmem>>, %arg11: memref<1x32xf32, #tpu.memory_space<vmem>>, %arg12: memref<16x32xf32, #tpu.memory_space<vmem>>, %arg13: memref<2x4x8x8xbf16, #tpu.memory_space<vmem>>, %arg14: memref<16x32xbf16, #tpu.memory_space<vmem>>) attributes {dimension_semantics = [#tpu.dimension_semantics<parallel>], iteration_bounds = array<i64: 2>, scalar_prefetch = 0 : i64, scratch_operands = 1 : i64, tpu.core_type = #tpu.core_type<tc>, window_params = [{transform_indices = @transform_0, window_bounds = array<i64: 16, 32>}, {transform_indices = @transform_1, window_bounds = array<i64: 16, 32>}, {transform_indices = @transform_2, window_bounds = array<i64: 16, 32>}, {pipeline_mode = #tpu.pipeline_mode<synchronous>, transform_indices = @transform_3, window_bounds = array<i64: 32, 32>}, {pipeline_mode = #tpu.pipeline_mode<synchronous>, transform_indices = @transform_4, window_bounds = array<i64: 32, 32>}, {pipeline_mode = #tpu.pipeline_mode<synchronous>, transform_indices = @transform_5, window_bounds = array<i64: 32, 32>}, {pipeline_mode = #tpu.pipeline_mode<synchronous>, transform_indices = @transform_6, window_bounds = array<i64: 1, 32>}, {pipeline_mode = #tpu.pipeline_mode<synchronous>, transform_indices = @transform_7, window_bounds = array<i64: 1, 32>}, {pipeline_mode = #tpu.pipeline_mode<synchronous>, transform_indices = @transform_8, window_bounds = array<i64: 1, 32>}, {pipeline_mode = #tpu.pipeline_mode<synchronous>, transform_indices = @transform_9, window_bounds = array<i64: 32, 32>}, {pipeline_mode = #tpu.pipeline_mode<synchronous>, transform_indices = @transform_10, window_bounds = array<i64: 1, 32>}, {transform_indices = @transform_11, window_bounds = array<i64: 16, 32>}, {transform_indices = @transform_12, window_bounds = array<i64: 2, 4, 8, 8>}]} {
    %c0 = arith.constant 0 : index
    %c0_0 = arith.constant 0 : index
    %0 = vector.load %arg1[%c0, %c0_0] : memref<16x32xbf16, #tpu.memory_space<vmem>>, vector<16x32xbf16>
    %c0_1 = arith.constant 0 : index
    %c0_2 = arith.constant 0 : index
    %1 = vector.load %arg4[%c0_1, %c0_2] : memref<32x32xbf16, #tpu.memory_space<vmem>>, vector<32x32xbf16>
    %cst = arith.constant dense<0.000000e+00> : vector<16x32xf32>
    %2 = tpu.matmul %0, %1, %cst {dimension_numbers = #tpu.dot_dimension_numbers<[1], [0], [0], [1], [0, 0, 1, 1], [], []>} : vector<16x32xbf16>, vector<32x32xbf16>, vector<16x32xf32> -> vector<16x32xf32>
    %c0_3 = arith.constant 0 : index
    %c0_4 = arith.constant 0 : index
    %3 = vector.load %arg7[%c0_3, %c0_4] : memref<1x32xf32, #tpu.memory_space<vmem>>, vector<1x32xf32>
    %4 = vector.broadcast %3 : vector<1x32xf32> to vector<16x32xf32>
    %5 = arith.addf %2, %4 : vector<16x32xf32>
    %c0_5 = arith.constant 0 : index
    %c0_6 = arith.constant 0 : index
    %6 = vector.load %arg2[%c0_5, %c0_6] : memref<16x32xbf16, #tpu.memory_space<vmem>>, vector<16x32xbf16>
    %c0_7 = arith.constant 0 : index
    %c0_8 = arith.constant 0 : index
    %7 = vector.load %arg5[%c0_7, %c0_8] : memref<32x32xbf16, #tpu.memory_space<vmem>>, vector<32x32xbf16>
    %cst_9 = arith.constant dense<0.000000e+00> : vector<16x32xf32>
    %8 = tpu.matmul %6, %7, %cst_9 {dimension_numbers = #tpu.dot_dimension_numbers<[1], [0], [0], [1], [0, 0, 1, 1], [], []>} : vector<16x32xbf16>, vector<32x32xbf16>, vector<16x32xf32> -> vector<16x32xf32>
    %c0_10 = arith.constant 0 : index
    %c0_11 = arith.constant 0 : index
    %9 = vector.load %arg8[%c0_10, %c0_11] : memref<1x32xf32, #tpu.memory_space<vmem>>, vector<1x32xf32>
    %10 = vector.broadcast %9 : vector<1x32xf32> to vector<16x32xf32>
    %11 = arith.addf %8, %10 : vector<16x32xf32>
    %c0_12 = arith.constant 0 : index
    %c0_13 = arith.constant 0 : index
    %12 = vector.load %arg3[%c0_12, %c0_13] : memref<16x32xbf16, #tpu.memory_space<vmem>>, vector<16x32xbf16>
    %c0_14 = arith.constant 0 : index
    %c0_15 = arith.constant 0 : index
    %13 = vector.load %arg6[%c0_14, %c0_15] : memref<32x32xbf16, #tpu.memory_space<vmem>>, vector<32x32xbf16>
    %cst_16 = arith.constant dense<0.000000e+00> : vector<16x32xf32>
    %14 = tpu.matmul %12, %13, %cst_16 {dimension_numbers = #tpu.dot_dimension_numbers<[1], [0], [0], [1], [0, 0, 1, 1], [], []>} : vector<16x32xbf16>, vector<32x32xbf16>, vector<16x32xf32> -> vector<16x32xf32>
    %c0_17 = arith.constant 0 : index
    %c0_18 = arith.constant 0 : index
    %15 = vector.load %arg9[%c0_17, %c0_18] : memref<1x32xf32, #tpu.memory_space<vmem>>, vector<1x32xf32>
    %16 = vector.broadcast %15 : vector<1x32xf32> to vector<16x32xf32>
    %17 = arith.addf %14, %16 : vector<16x32xf32>
    %18 = vector.extract_strided_slice %5 {offsets = [0, 0], sizes = [8, 8], strides = [1, 1]} : vector<16x32xf32> to vector<8x8xf32>
    %19 = vector.extract_strided_slice %11 {offsets = [0, 0], sizes = [8, 8], strides = [1, 1]} : vector<16x32xf32> to vector<8x8xf32>
    %20 = vector.extract_strided_slice %17 {offsets = [0, 0], sizes = [8, 8], strides = [1, 1]} : vector<16x32xf32> to vector<8x8xf32>
    %cst_19 = arith.constant dense<0.000000e+00> : vector<8x8xf32>
    %21 = tpu.matmul %18, %19, %cst_19 {dimension_numbers = #tpu.dot_dimension_numbers<[1], [1], [0], [0], [0, 0, 1, 0], [], []>} : vector<8x8xf32>, vector<8x8xf32>, vector<8x8xf32> -> vector<8x8xf32>
    %cst_20 = arith.constant dense<0xFF800000> : vector<8xf32>
    %22 = vector.multi_reduction <maximumf>, %21, %cst_20 [1] : vector<8x8xf32> to vector<8xf32>
    %23 = vector.shape_cast %22 : vector<8xf32> to vector<8x1xf32>
    %24 = vector.broadcast %23 : vector<8x1xf32> to vector<8x8xf32>
    %25 = arith.subf %21, %24 : vector<8x8xf32>
    %26 = math.exp %25 : vector<8x8xf32>
    %cst_21 = arith.constant dense<0.000000e+00> : vector<8xf32>
    %27 = vector.multi_reduction <add>, %26, %cst_21 [1] : vector<8x8xf32> to vector<8xf32>
    %28 = vector.shape_cast %27 : vector<8xf32> to vector<8x1xf32>
    %29 = tpu.reciprocal %28 {approx = true} : vector<8x1xf32> -> vector<8x1xf32>
    %30 = vector.broadcast %29 : vector<8x1xf32> to vector<8x8xf32>
    %31 = arith.mulf %26, %30 : vector<8x8xf32>
    %32 = arith.truncf %31 : vector<8x8xf32> to vector<8x8xbf16>
    %c0_22 = arith.constant 0 : index
    %c0_23 = arith.constant 0 : index
    %c0_24 = arith.constant 0 : index
    %c0_25 = arith.constant 0 : index
    %33 = vector.load %arg13[%c0_22, %c0_23, %c0_24, %c0_25] : memref<2x4x8x8xbf16, #tpu.memory_space<vmem>>, vector<1x1x8x8xbf16>
    %34 = vector.shape_cast %33 : vector<1x1x8x8xbf16> to vector<8x8xbf16>
    %35 = vector.shape_cast %32 : vector<8x8xbf16> to vector<1x1x8x8xbf16>
    tpu.vector_store %arg13[%c0_22, %c0_23, %c0_24, %c0_25], %35 {strides = array<i32>} : memref<2x4x8x8xbf16, #tpu.memory_space<vmem>>, vector<1x1x8x8xbf16>,
    %cst_26 = arith.constant dense<0.000000e+00> : vector<8x8xf32>
    %36 = tpu.matmul %31, %20, %cst_26 {dimension_numbers = #tpu.dot_dimension_numbers<[1], [0], [0], [1], [0, 0, 1, 1], [], []>} : vector<8x8xf32>, vector<8x8xf32>, vector<8x8xf32> -> vector<8x8xf32>
    %37 = arith.truncf %36 : vector<8x8xf32> to vector<8x8xbf16>
    %c0_27 = arith.constant 0 : index
    %c0_28 = arith.constant 0 : index
    %38 = vector.load %arg14[%c0_27, %c0_28] : memref<16x32xbf16, #tpu.memory_space<vmem>>, vector<8x8xbf16>
    tpu.vector_store %arg14[%c0_27, %c0_28], %37 {strides = array<i32>} : memref<16x32xbf16, #tpu.memory_space<vmem>>, vector<8x8xbf16>,
    %39 = vector.extract_strided_slice %5 {offsets = [0, 8], sizes = [8, 8], strides = [1, 1]} : vector<16x32xf32> to vector<8x8xf32>
    %40 = vector.extract_strided_slice %11 {offsets = [0, 8], sizes = [8, 8], strides = [1, 1]} : vector<16x32xf32> to vector<8x8xf32>
    %41 = vector.extract_strided_slice %17 {offsets = [0, 8], sizes = [8, 8], strides = [1, 1]} : vector<16x32xf32> to vector<8x8xf32>
    %cst_29 = arith.constant dense<0.000000e+00> : vector<8x8xf32>
    %42 = tpu.matmul %39, %40, %cst_29 {dimension_numbers = #tpu.dot_dimension_numbers<[1], [1], [0], [0], [0, 0, 1, 0], [], []>} : vector<8x8xf32>, vector<8x8xf32>, vector<8x8xf32> -> vector<8x8xf32>
    %cst_30 = arith.constant dense<0xFF800000> : vector<8xf32>
    %43 = vector.multi_reduction <maximumf>, %42, %cst_30 [1] : vector<8x8xf32> to vector<8xf32>
    %44 = vector.shape_cast %43 : vector<8xf32> to vector<8x1xf32>
    %45 = vector.broadcast %44 : vector<8x1xf32> to vector<8x8xf32>
    %46 = arith.subf %42, %45 : vector<8x8xf32>
    %47 = math.exp %46 : vector<8x8xf32>
    %cst_31 = arith.constant dense<0.000000e+00> : vector<8xf32>
    %48 = vector.multi_reduction <add>, %47, %cst_31 [1] : vector<8x8xf32> to vector<8xf32>
    %49 = vector.shape_cast %48 : vector<8xf32> to vector<8x1xf32>
    %50 = tpu.reciprocal %49 {approx = true} : vector<8x1xf32> -> vector<8x1xf32>
    %51 = vector.broadcast %50 : vector<8x1xf32> to vector<8x8xf32>
    %52 = arith.mulf %47, %51 : vector<8x8xf32>
    %53 = arith.truncf %52 : vector<8x8xf32> to vector<8x8xbf16>
    %c0_32 = arith.constant 0 : index
    %c1 = arith.constant 1 : index
    %c0_33 = arith.constant 0 : index
    %c0_34 = arith.constant 0 : index
    %54 = vector.load %arg13[%c0_32, %c1, %c0_33, %c0_34] : memref<2x4x8x8xbf16, #tpu.memory_space<vmem>>, vector<1x1x8x8xbf16>
    %55 = vector.shape_cast %54 : vector<1x1x8x8xbf16> to vector<8x8xbf16>
    %56 = vector.shape_cast %53 : vector<8x8xbf16> to vector<1x1x8x8xbf16>
    tpu.vector_store %arg13[%c0_32, %c1, %c0_33, %c0_34], %56 {strides = array<i32>} : memref<2x4x8x8xbf16, #tpu.memory_space<vmem>>, vector<1x1x8x8xbf16>,
    %cst_35 = arith.constant dense<0.000000e+00> : vector<8x8xf32>
    %57 = tpu.matmul %52, %41, %cst_35 {dimension_numbers = #tpu.dot_dimension_numbers<[1], [0], [0], [1], [0, 0, 1, 1], [], []>} : vector<8x8xf32>, vector<8x8xf32>, vector<8x8xf32> -> vector<8x8xf32>
    %58 = arith.truncf %57 : vector<8x8xf32> to vector<8x8xbf16>
    %c0_36 = arith.constant 0 : index
    %c8 = arith.constant 8 : index
    %59 = vector.load %arg14[%c0_36, %c8] : memref<16x32xbf16, #tpu.memory_space<vmem>>, vector<8x8xbf16>
    tpu.vector_store %arg14[%c0_36, %c8], %58 {strides = array<i32>} : memref<16x32xbf16, #tpu.memory_space<vmem>>, vector<8x8xbf16>,
    %60 = vector.extract_strided_slice %5 {offsets = [0, 16], sizes = [8, 8], strides = [1, 1]} : vector<16x32xf32> to vector<8x8xf32>
    %61 = vector.extract_strided_slice %11 {offsets = [0, 16], sizes = [8, 8], strides = [1, 1]} : vector<16x32xf32> to vector<8x8xf32>
    %62 = vector.extract_strided_slice %17 {offsets = [0, 16], sizes = [8, 8], strides = [1, 1]} : vector<16x32xf32> to vector<8x8xf32>
    %cst_37 = arith.constant dense<0.000000e+00> : vector<8x8xf32>
    %63 = tpu.matmul %60, %61, %cst_37 {dimension_numbers = #tpu.dot_dimension_numbers<[1], [1], [0], [0], [0, 0, 1, 0], [], []>} : vector<8x8xf32>, vector<8x8xf32>, vector<8x8xf32> -> vector<8x8xf32>
    %cst_38 = arith.constant dense<0xFF800000> : vector<8xf32>
    %64 = vector.multi_reduction <maximumf>, %63, %cst_38 [1] : vector<8x8xf32> to vector<8xf32>
    %65 = vector.shape_cast %64 : vector<8xf32> to vector<8x1xf32>
    %66 = vector.broadcast %65 : vector<8x1xf32> to vector<8x8xf32>
    %67 = arith.subf %63, %66 : vector<8x8xf32>
    %68 = math.exp %67 : vector<8x8xf32>
    %cst_39 = arith.constant dense<0.000000e+00> : vector<8xf32>
    %69 = vector.multi_reduction <add>, %68, %cst_39 [1] : vector<8x8xf32> to vector<8xf32>
    %70 = vector.shape_cast %69 : vector<8xf32> to vector<8x1xf32>
    %71 = tpu.reciprocal %70 {approx = true} : vector<8x1xf32> -> vector<8x1xf32>
    %72 = vector.broadcast %71 : vector<8x1xf32> to vector<8x8xf32>
    %73 = arith.mulf %68, %72 : vector<8x8xf32>
    %74 = arith.truncf %73 : vector<8x8xf32> to vector<8x8xbf16>
    %c0_40 = arith.constant 0 : index
    %c2 = arith.constant 2 : index
    %c0_41 = arith.constant 0 : index
    %c0_42 = arith.constant 0 : index
    %75 = vector.load %arg13[%c0_40, %c2, %c0_41, %c0_42] : memref<2x4x8x8xbf16, #tpu.memory_space<vmem>>, vector<1x1x8x8xbf16>
    %76 = vector.shape_cast %75 : vector<1x1x8x8xbf16> to vector<8x8xbf16>
    %77 = vector.shape_cast %74 : vector<8x8xbf16> to vector<1x1x8x8xbf16>
    tpu.vector_store %arg13[%c0_40, %c2, %c0_41, %c0_42], %77 {strides = array<i32>} : memref<2x4x8x8xbf16, #tpu.memory_space<vmem>>, vector<1x1x8x8xbf16>,
    %cst_43 = arith.constant dense<0.000000e+00> : vector<8x8xf32>
    %78 = tpu.matmul %73, %62, %cst_43 {dimension_numbers = #tpu.dot_dimension_numbers<[1], [0], [0], [1], [0, 0, 1, 1], [], []>} : vector<8x8xf32>, vector<8x8xf32>, vector<8x8xf32> -> vector<8x8xf32>
    %79 = arith.truncf %78 : vector<8x8xf32> to vector<8x8xbf16>
    %c0_44 = arith.constant 0 : index
    %c16 = arith.constant 16 : index
    %80 = vector.load %arg14[%c0_44, %c16] : memref<16x32xbf16, #tpu.memory_space<vmem>>, vector<8x8xbf16>
    tpu.vector_store %arg14[%c0_44, %c16], %79 {strides = array<i32>} : memref<16x32xbf16, #tpu.memory_space<vmem>>, vector<8x8xbf16>,
    %81 = vector.extract_strided_slice %5 {offsets = [0, 24], sizes = [8, 8], strides = [1, 1]} : vector<16x32xf32> to vector<8x8xf32>
    %82 = vector.extract_strided_slice %11 {offsets = [0, 24], sizes = [8, 8], strides = [1, 1]} : vector<16x32xf32> to vector<8x8xf32>
    %83 = vector.extract_strided_slice %17 {offsets = [0, 24], sizes = [8, 8], strides = [1, 1]} : vector<16x32xf32> to vector<8x8xf32>
    %cst_45 = arith.constant dense<0.000000e+00> : vector<8x8xf32>
    %84 = tpu.matmul %81, %82, %cst_45 {dimension_numbers = #tpu.dot_dimension_numbers<[1], [1], [0], [0], [0, 0, 1, 0], [], []>} : vector<8x8xf32>, vector<8x8xf32>, vector<8x8xf32> -> vector<8x8xf32>
    %cst_46 = arith.constant dense<0xFF800000> : vector<8xf32>
    %85 = vector.multi_reduction <maximumf>, %84, %cst_46 [1] : vector<8x8xf32> to vector<8xf32>
    %86 = vector.shape_cast %85 : vector<8xf32> to vector<8x1xf32>
    %87 = vector.broadcast %86 : vector<8x1xf32> to vector<8x8xf32>
    %88 = arith.subf %84, %87 : vector<8x8xf32>
    %89 = math.exp %88 : vector<8x8xf32>
    %cst_47 = arith.constant dense<0.000000e+00> : vector<8xf32>
    %90 = vector.multi_reduction <add>, %89, %cst_47 [1] : vector<8x8xf32> to vector<8xf32>
    %91 = vector.shape_cast %90 : vector<8xf32> to vector<8x1xf32>
    %92 = tpu.reciprocal %91 {approx = true} : vector<8x1xf32> -> vector<8x1xf32>
    %93 = vector.broadcast %92 : vector<8x1xf32> to vector<8x8xf32>
    %94 = arith.mulf %89, %93 : vector<8x8xf32>
    %95 = arith.truncf %94 : vector<8x8xf32> to vector<8x8xbf16>
    %c0_48 = arith.constant 0 : index
    %c3 = arith.constant 3 : index
    %c0_49 = arith.constant 0 : index
    %c0_50 = arith.constant 0 : index
    %96 = vector.load %arg13[%c0_48, %c3, %c0_49, %c0_50] : memref<2x4x8x8xbf16, #tpu.memory_space<vmem>>, vector<1x1x8x8xbf16>
    %97 = vector.shape_cast %96 : vector<1x1x8x8xbf16> to vector<8x8xbf16>
    %98 = vector.shape_cast %95 : vector<8x8xbf16> to vector<1x1x8x8xbf16>
    tpu.vector_store %arg13[%c0_48, %c3, %c0_49, %c0_50], %98 {strides = array<i32>} : memref<2x4x8x8xbf16, #tpu.memory_space<vmem>>, vector<1x1x8x8xbf16>,
    %cst_51 = arith.constant dense<0.000000e+00> : vector<8x8xf32>
    %99 = tpu.matmul %94, %83, %cst_51 {dimension_numbers = #tpu.dot_dimension_numbers<[1], [0], [0], [1], [0, 0, 1, 1], [], []>} : vector<8x8xf32>, vector<8x8xf32>, vector<8x8xf32> -> vector<8x8xf32>
    %100 = arith.truncf %99 : vector<8x8xf32> to vector<8x8xbf16>
    %c0_52 = arith.constant 0 : index
    %c24 = arith.constant 24 : index
    %101 = vector.load %arg14[%c0_52, %c24] : memref<16x32xbf16, #tpu.memory_space<vmem>>, vector<8x8xbf16>
    tpu.vector_store %arg14[%c0_52, %c24], %100 {strides = array<i32>} : memref<16x32xbf16, #tpu.memory_space<vmem>>, vector<8x8xbf16>,
    %102 = vector.extract_strided_slice %5 {offsets = [8, 0], sizes = [8, 8], strides = [1, 1]} : vector<16x32xf32> to vector<8x8xf32>
    %103 = vector.extract_strided_slice %11 {offsets = [8, 0], sizes = [8, 8], strides = [1, 1]} : vector<16x32xf32> to vector<8x8xf32>
    %104 = vector.extract_strided_slice %17 {offsets = [8, 0], sizes = [8, 8], strides = [1, 1]} : vector<16x32xf32> to vector<8x8xf32>
    %cst_53 = arith.constant dense<0.000000e+00> : vector<8x8xf32>
    %105 = tpu.matmul %102, %103, %cst_53 {dimension_numbers = #tpu.dot_dimension_numbers<[1], [1], [0], [0], [0, 0, 1, 0], [], []>} : vector<8x8xf32>, vector<8x8xf32>, vector<8x8xf32> -> vector<8x8xf32>
    %cst_54 = arith.constant dense<0xFF800000> : vector<8xf32>
    %106 = vector.multi_reduction <maximumf>, %105, %cst_54 [1] : vector<8x8xf32> to vector<8xf32>
    %107 = vector.shape_cast %106 : vector<8xf32> to vector<8x1xf32>
    %108 = vector.broadcast %107 : vector<8x1xf32> to vector<8x8xf32>
    %109 = arith.subf %105, %108 : vector<8x8xf32>
    %110 = math.exp %109 : vector<8x8xf32>
    %cst_55 = arith.constant dense<0.000000e+00> : vector<8xf32>
    %111 = vector.multi_reduction <add>, %110, %cst_55 [1] : vector<8x8xf32> to vector<8xf32>
    %112 = vector.shape_cast %111 : vector<8xf32> to vector<8x1xf32>
    %113 = tpu.reciprocal %112 {approx = true} : vector<8x1xf32> -> vector<8x1xf32>
    %114 = vector.broadcast %113 : vector<8x1xf32> to vector<8x8xf32>
    %115 = arith.mulf %110, %114 : vector<8x8xf32>
    %116 = arith.truncf %115 : vector<8x8xf32> to vector<8x8xbf16>
    %c1_56 = arith.constant 1 : index
    %c0_57 = arith.constant 0 : index
    %c0_58 = arith.constant 0 : index
    %c0_59 = arith.constant 0 : index
    %117 = vector.load %arg13[%c1_56, %c0_57, %c0_58, %c0_59] : memref<2x4x8x8xbf16, #tpu.memory_space<vmem>>, vector<1x1x8x8xbf16>
    %118 = vector.shape_cast %117 : vector<1x1x8x8xbf16> to vector<8x8xbf16>
    %119 = vector.shape_cast %116 : vector<8x8xbf16> to vector<1x1x8x8xbf16>
    tpu.vector_store %arg13[%c1_56, %c0_57, %c0_58, %c0_59], %119 {strides = array<i32>} : memref<2x4x8x8xbf16, #tpu.memory_space<vmem>>, vector<1x1x8x8xbf16>,
    %cst_60 = arith.constant dense<0.000000e+00> : vector<8x8xf32>
    %120 = tpu.matmul %115, %104, %cst_60 {dimension_numbers = #tpu.dot_dimension_numbers<[1], [0], [0], [1], [0, 0, 1, 1], [], []>} : vector<8x8xf32>, vector<8x8xf32>, vector<8x8xf32> -> vector<8x8xf32>
    %121 = arith.truncf %120 : vector<8x8xf32> to vector<8x8xbf16>
    %c8_61 = arith.constant 8 : index
    %c0_62 = arith.constant 0 : index
    %122 = vector.load %arg14[%c8_61, %c0_62] : memref<16x32xbf16, #tpu.memory_space<vmem>>, vector<8x8xbf16>
    tpu.vector_store %arg14[%c8_61, %c0_62], %121 {strides = array<i32>} : memref<16x32xbf16, #tpu.memory_space<vmem>>, vector<8x8xbf16>,
    %123 = vector.extract_strided_slice %5 {offsets = [8, 8], sizes = [8, 8], strides = [1, 1]} : vector<16x32xf32> to vector<8x8xf32>
    %124 = vector.extract_strided_slice %11 {offsets = [8, 8], sizes = [8, 8], strides = [1, 1]} : vector<16x32xf32> to vector<8x8xf32>
    %125 = vector.extract_strided_slice %17 {offsets = [8, 8], sizes = [8, 8], strides = [1, 1]} : vector<16x32xf32> to vector<8x8xf32>
    %cst_63 = arith.constant dense<0.000000e+00> : vector<8x8xf32>
    %126 = tpu.matmul %123, %124, %cst_63 {dimension_numbers = #tpu.dot_dimension_numbers<[1], [1], [0], [0], [0, 0, 1, 0], [], []>} : vector<8x8xf32>, vector<8x8xf32>, vector<8x8xf32> -> vector<8x8xf32>
    %cst_64 = arith.constant dense<0xFF800000> : vector<8xf32>
    %127 = vector.multi_reduction <maximumf>, %126, %cst_64 [1] : vector<8x8xf32> to vector<8xf32>
    %128 = vector.shape_cast %127 : vector<8xf32> to vector<8x1xf32>
    %129 = vector.broadcast %128 : vector<8x1xf32> to vector<8x8xf32>
    %130 = arith.subf %126, %129 : vector<8x8xf32>
    %131 = math.exp %130 : vector<8x8xf32>
    %cst_65 = arith.constant dense<0.000000e+00> : vector<8xf32>
    %132 = vector.multi_reduction <add>, %131, %cst_65 [1] : vector<8x8xf32> to vector<8xf32>
    %133 = vector.shape_cast %132 : vector<8xf32> to vector<8x1xf32>
    %134 = tpu.reciprocal %133 {approx = true} : vector<8x1xf32> -> vector<8x1xf32>
    %135 = vector.broadcast %134 : vector<8x1xf32> to vector<8x8xf32>
    %136 = arith.mulf %131, %135 : vector<8x8xf32>
    %137 = arith.truncf %136 : vector<8x8xf32> to vector<8x8xbf16>
    %c1_66 = arith.constant 1 : index
    %c1_67 = arith.constant 1 : index
    %c0_68 = arith.constant 0 : index
    %c0_69 = arith.constant 0 : index
    %138 = vector.load %arg13[%c1_66, %c1_67, %c0_68, %c0_69] : memref<2x4x8x8xbf16, #tpu.memory_space<vmem>>, vector<1x1x8x8xbf16>
    %139 = vector.shape_cast %138 : vector<1x1x8x8xbf16> to vector<8x8xbf16>
    %140 = vector.shape_cast %137 : vector<8x8xbf16> to vector<1x1x8x8xbf16>
    tpu.vector_store %arg13[%c1_66, %c1_67, %c0_68, %c0_69], %140 {strides = array<i32>} : memref<2x4x8x8xbf16, #tpu.memory_space<vmem>>, vector<1x1x8x8xbf16>,
    %cst_70 = arith.constant dense<0.000000e+00> : vector<8x8xf32>
    %141 = tpu.matmul %136, %125, %cst_70 {dimension_numbers = #tpu.dot_dimension_numbers<[1], [0], [0], [1], [0, 0, 1, 1], [], []>} : vector<8x8xf32>, vector<8x8xf32>, vector<8x8xf32> -> vector<8x8xf32>
    %142 = arith.truncf %141 : vector<8x8xf32> to vector<8x8xbf16>
    %c8_71 = arith.constant 8 : index
    %c8_72 = arith.constant 8 : index
    %143 = vector.load %arg14[%c8_71, %c8_72] : memref<16x32xbf16, #tpu.memory_space<vmem>>, vector<8x8xbf16>
    tpu.vector_store %arg14[%c8_71, %c8_72], %142 {strides = array<i32>} : memref<16x32xbf16, #tpu.memory_space<vmem>>, vector<8x8xbf16>,
    %144 = vector.extract_strided_slice %5 {offsets = [8, 16], sizes = [8, 8], strides = [1, 1]} : vector<16x32xf32> to vector<8x8xf32>
    %145 = vector.extract_strided_slice %11 {offsets = [8, 16], sizes = [8, 8], strides = [1, 1]} : vector<16x32xf32> to vector<8x8xf32>
    %146 = vector.extract_strided_slice %17 {offsets = [8, 16], sizes = [8, 8], strides = [1, 1]} : vector<16x32xf32> to vector<8x8xf32>
    %cst_73 = arith.constant dense<0.000000e+00> : vector<8x8xf32>
    %147 = tpu.matmul %144, %145, %cst_73 {dimension_numbers = #tpu.dot_dimension_numbers<[1], [1], [0], [0], [0, 0, 1, 0], [], []>} : vector<8x8xf32>, vector<8x8xf32>, vector<8x8xf32> -> vector<8x8xf32>
    %cst_74 = arith.constant dense<0xFF800000> : vector<8xf32>
    %148 = vector.multi_reduction <maximumf>, %147, %cst_74 [1] : vector<8x8xf32> to vector<8xf32>
    %149 = vector.shape_cast %148 : vector<8xf32> to vector<8x1xf32>
    %150 = vector.broadcast %149 : vector<8x1xf32> to vector<8x8xf32>
    %151 = arith.subf %147, %150 : vector<8x8xf32>
    %152 = math.exp %151 : vector<8x8xf32>
    %cst_75 = arith.constant dense<0.000000e+00> : vector<8xf32>
    %153 = vector.multi_reduction <add>, %152, %cst_75 [1] : vector<8x8xf32> to vector<8xf32>
    %154 = vector.shape_cast %153 : vector<8xf32> to vector<8x1xf32>
    %155 = tpu.reciprocal %154 {approx = true} : vector<8x1xf32> -> vector<8x1xf32>
    %156 = vector.broadcast %155 : vector<8x1xf32> to vector<8x8xf32>
    %157 = arith.mulf %152, %156 : vector<8x8xf32>
    %158 = arith.truncf %157 : vector<8x8xf32> to vector<8x8xbf16>
    %c1_76 = arith.constant 1 : index
    %c2_77 = arith.constant 2 : index
    %c0_78 = arith.constant 0 : index
    %c0_79 = arith.constant 0 : index
    %159 = vector.load %arg13[%c1_76, %c2_77, %c0_78, %c0_79] : memref<2x4x8x8xbf16, #tpu.memory_space<vmem>>, vector<1x1x8x8xbf16>
    %160 = vector.shape_cast %159 : vector<1x1x8x8xbf16> to vector<8x8xbf16>
    %161 = vector.shape_cast %158 : vector<8x8xbf16> to vector<1x1x8x8xbf16>
    tpu.vector_store %arg13[%c1_76, %c2_77, %c0_78, %c0_79], %161 {strides = array<i32>} : memref<2x4x8x8xbf16, #tpu.memory_space<vmem>>, vector<1x1x8x8xbf16>,
    %cst_80 = arith.constant dense<0.000000e+00> : vector<8x8xf32>
    %162 = tpu.matmul %157, %146, %cst_80 {dimension_numbers = #tpu.dot_dimension_numbers<[1], [0], [0], [1], [0, 0, 1, 1], [], []>} : vector<8x8xf32>, vector<8x8xf32>, vector<8x8xf32> -> vector<8x8xf32>
    %163 = arith.truncf %162 : vector<8x8xf32> to vector<8x8xbf16>
    %c8_81 = arith.constant 8 : index
    %c16_82 = arith.constant 16 : index
    %164 = vector.load %arg14[%c8_81, %c16_82] : memref<16x32xbf16, #tpu.memory_space<vmem>>, vector<8x8xbf16>
    tpu.vector_store %arg14[%c8_81, %c16_82], %163 {strides = array<i32>} : memref<16x32xbf16, #tpu.memory_space<vmem>>, vector<8x8xbf16>,
    %165 = vector.extract_strided_slice %5 {offsets = [8, 24], sizes = [8, 8], strides = [1, 1]} : vector<16x32xf32> to vector<8x8xf32>
    %166 = vector.extract_strided_slice %11 {offsets = [8, 24], sizes = [8, 8], strides = [1, 1]} : vector<16x32xf32> to vector<8x8xf32>
    %167 = vector.extract_strided_slice %17 {offsets = [8, 24], sizes = [8, 8], strides = [1, 1]} : vector<16x32xf32> to vector<8x8xf32>
    %cst_83 = arith.constant dense<0.000000e+00> : vector<8x8xf32>
    %168 = tpu.matmul %165, %166, %cst_83 {dimension_numbers = #tpu.dot_dimension_numbers<[1], [1], [0], [0], [0, 0, 1, 0], [], []>} : vector<8x8xf32>, vector<8x8xf32>, vector<8x8xf32> -> vector<8x8xf32>
    %cst_84 = arith.constant dense<0xFF800000> : vector<8xf32>
    %169 = vector.multi_reduction <maximumf>, %168, %cst_84 [1] : vector<8x8xf32> to vector<8xf32>
    %170 = vector.shape_cast %169 : vector<8xf32> to vector<8x1xf32>
    %171 = vector.broadcast %170 : vector<8x1xf32> to vector<8x8xf32>
    %172 = arith.subf %168, %171 : vector<8x8xf32>
    %173 = math.exp %172 : vector<8x8xf32>
    %cst_85 = arith.constant dense<0.000000e+00> : vector<8xf32>
    %174 = vector.multi_reduction <add>, %173, %cst_85 [1] : vector<8x8xf32> to vector<8xf32>
    %175 = vector.shape_cast %174 : vector<8xf32> to vector<8x1xf32>
    %176 = tpu.reciprocal %175 {approx = true} : vector<8x1xf32> -> vector<8x1xf32>
    %177 = vector.broadcast %176 : vector<8x1xf32> to vector<8x8xf32>
    %178 = arith.mulf %173, %177 : vector<8x8xf32>
    %179 = arith.truncf %178 : vector<8x8xf32> to vector<8x8xbf16>
    %c1_86 = arith.constant 1 : index
    %c3_87 = arith.constant 3 : index
    %c0_88 = arith.constant 0 : index
    %c0_89 = arith.constant 0 : index
    %180 = vector.load %arg13[%c1_86, %c3_87, %c0_88, %c0_89] : memref<2x4x8x8xbf16, #tpu.memory_space<vmem>>, vector<1x1x8x8xbf16>
    %181 = vector.shape_cast %180 : vector<1x1x8x8xbf16> to vector<8x8xbf16>
    %182 = vector.shape_cast %179 : vector<8x8xbf16> to vector<1x1x8x8xbf16>
    tpu.vector_store %arg13[%c1_86, %c3_87, %c0_88, %c0_89], %182 {strides = array<i32>} : memref<2x4x8x8xbf16, #tpu.memory_space<vmem>>, vector<1x1x8x8xbf16>,
    %cst_90 = arith.constant dense<0.000000e+00> : vector<8x8xf32>
    %183 = tpu.matmul %178, %167, %cst_90 {dimension_numbers = #tpu.dot_dimension_numbers<[1], [0], [0], [1], [0, 0, 1, 1], [], []>} : vector<8x8xf32>, vector<8x8xf32>, vector<8x8xf32> -> vector<8x8xf32>
    %184 = arith.truncf %183 : vector<8x8xf32> to vector<8x8xbf16>
    %c8_91 = arith.constant 8 : index
    %c24_92 = arith.constant 24 : index
    %185 = vector.load %arg14[%c8_91, %c24_92] : memref<16x32xbf16, #tpu.memory_space<vmem>>, vector<8x8xbf16>
    tpu.vector_store %arg14[%c8_91, %c24_92], %184 {strides = array<i32>} : memref<16x32xbf16, #tpu.memory_space<vmem>>, vector<8x8xbf16>,
    %c0_93 = arith.constant 0 : index
    %c0_94 = arith.constant 0 : index
    %186 = vector.load %arg14[%c0_93, %c0_94] : memref<16x32xbf16, #tpu.memory_space<vmem>>, vector<16x32xbf16>
    %c0_95 = arith.constant 0 : index
    %c0_96 = arith.constant 0 : index
    %187 = vector.load %arg10[%c0_95, %c0_96] : memref<32x32xbf16, #tpu.memory_space<vmem>>, vector<32x32xbf16>
    %cst_97 = arith.constant dense<0.000000e+00> : vector<16x32xf32>
    %188 = tpu.matmul %186, %187, %cst_97 {dimension_numbers = #tpu.dot_dimension_numbers<[1], [0], [0], [1], [0, 0, 1, 1], [], []>} : vector<16x32xbf16>, vector<32x32xbf16>, vector<16x32xf32> -> vector<16x32xf32>
    %c0_98 = arith.constant 0 : index
    %c0_99 = arith.constant 0 : index
    %189 = vector.load %arg11[%c0_98, %c0_99] : memref<1x32xf32, #tpu.memory_space<vmem>>, vector<1x32xf32>
    %190 = vector.broadcast %189 : vector<1x32xf32> to vector<16x32xf32>
    %191 = arith.addf %188, %190 : vector<16x32xf32>
    %c0_100 = arith.constant 0 : index
    %c0_101 = arith.constant 0 : index
    %192 = vector.load %arg12[%c0_100, %c0_101] : memref<16x32xf32, #tpu.memory_space<vmem>>, vector<16x32xf32>
    tpu.vector_store %arg12[%c0_100, %c0_101], %191 {strides = array<i32>} : memref<16x32xf32, #tpu.memory_space<vmem>>, vector<16x32xf32>,
    return
  }
  func.func @transform_0(%arg0: i32) -> (i32, i32) {
    %c0_i32 = arith.constant 0 : i32
    %c0_i32_0 = arith.constant 0 : i32
    return %arg0, %c0_i32 : i32, i32
  }
  func.func @transform_1(%arg0: i32) -> (i32, i32) {
    %c0_i32 = arith.constant 0 : i32
    %c0_i32_0 = arith.constant 0 : i32
    return %arg0, %c0_i32 : i32, i32
  }
  func.func @transform_2(%arg0: i32) -> (i32, i32) {
    %c0_i32 = arith.constant 0 : i32
    %c0_i32_0 = arith.constant 0 : i32
    return %arg0, %c0_i32 : i32, i32
  }
  func.func @transform_3(%arg0: i32) -> (i32, i32) {
    %c0_i32 = arith.constant 0 : i32
    %c0_i32_0 = arith.constant 0 : i32
    %c0_i32_1 = arith.constant 0 : i32
    return %c0_i32, %c0_i32_0 : i32, i32
  }
  func.func @transform_4(%arg0: i32) -> (i32, i32) {
    %c0_i32 = arith.constant 0 : i32
    %c0_i32_0 = arith.constant 0 : i32
    %c0_i32_1 = arith.constant 0 : i32
    return %c0_i32, %c0_i32_0 : i32, i32
  }
  func.func @transform_5(%arg0: i32) -> (i32, i32) {
    %c0_i32 = arith.constant 0 : i32
    %c0_i32_0 = arith.constant 0 : i32
    %c0_i32_1 = arith.constant 0 : i32
    return %c0_i32, %c0_i32_0 : i32, i32
  }
  func.func @transform_6(%arg0: i32) -> (i32, i32) {
    %c0_i32 = arith.constant 0 : i32
    %c0_i32_0 = arith.constant 0 : i32
    %c0_i32_1 = arith.constant 0 : i32
    return %c0_i32, %c0_i32_0 : i32, i32
  }
  func.func @transform_7(%arg0: i32) -> (i32, i32) {
    %c0_i32 = arith.constant 0 : i32
    %c0_i32_0 = arith.constant 0 : i32
    %c0_i32_1 = arith.constant 0 : i32
    return %c0_i32, %c0_i32_0 : i32, i32
  }
  func.func @transform_8(%arg0: i32) -> (i32, i32) {
    %c0_i32 = arith.constant 0 : i32
    %c0_i32_0 = arith.constant 0 : i32
    %c0_i32_1 = arith.constant 0 : i32
    return %c0_i32, %c0_i32_0 : i32, i32
  }
  func.func @transform_9(%arg0: i32) -> (i32, i32) {
    %c0_i32 = arith.constant 0 : i32
    %c0_i32_0 = arith.constant 0 : i32
    %c0_i32_1 = arith.constant 0 : i32
    return %c0_i32, %c0_i32_0 : i32, i32
  }
  func.func @transform_10(%arg0: i32) -> (i32, i32) {
    %c0_i32 = arith.constant 0 : i32
    %c0_i32_0 = arith.constant 0 : i32
    %c0_i32_1 = arith.constant 0 : i32
    return %c0_i32, %c0_i32_0 : i32, i32
  }
  func.func @transform_11(%arg0: i32) -> (i32, i32) {
    %c0_i32 = arith.constant 0 : i32
    %c0_i32_0 = arith.constant 0 : i32
    return %arg0, %c0_i32 : i32, i32
  }
  func.func @transform_12(%arg0: i32) -> (i32, i32, i32, i32) {
    %c0_i32 = arith.constant 0 : i32
    %c0_i32_0 = arith.constant 0 : i32
    %c0_i32_1 = arith.constant 0 : i32
    %c0_i32_2 = arith.constant 0 : i32
    return %arg0, %c0_i32, %c0_i32_0, %c0_i32_1 : i32, i32, i32, i32
  }
}

</mosaic_0001>

<llo_original>
// kernel: tpu_custom_call.1
$region0: #{tpu_custom_call.1}
  #allocation0 [shape = 'u32[]', space=smem, size = 0x4, offset = 0x4, fixed_abs, tag = 'smem constant byte address 0x4 - core index']
  #allocation1 [shape = 'u32[144,128]{1,0:T(1,128)}', space=vmem, size = 0x12000, scoped, tag = 'internal scratch']
  #allocation2 [shape = 'bf16[16,32]{1,0:T(16,128)(2,1)}', space=vmem, size = 0x1000, scoped, tag = 'scratch operand']
  %s0 = inlined_call_operand.hbm [shape: bf16[32,32], index: 0, kind: input, shape index: {}]
  %s1 = inlined_call_operand.hbm [shape: bf16[32,32], index: 1, kind: input, shape index: {}]
  %s2 = inlined_call_operand.hbm [shape: bf16[32,32], index: 2, kind: input, shape index: {}]
  %s3 = inlined_call_operand.hbm [shape: bf16[32,32], index: 3, kind: input, shape index: {}]
  %s4 = inlined_call_operand.hbm [shape: bf16[32,32], index: 4, kind: input, shape index: {}]
  %s5 = inlined_call_operand.vmem [shape: bf16[32,32], index: 5, kind: input, shape index: {}]
  %s6 = inlined_call_operand.vmem [shape: f32[1,32], index: 6, kind: input, shape index: {}]
  %s7 = inlined_call_operand.vmem [shape: f32[1,32], index: 7, kind: input, shape index: {}]
  %s8 = inlined_call_operand.hbm [shape: f32[1,32], index: 8, kind: input, shape index: {}]
  %s9 = inlined_call_operand.vmem [shape: bf16[32,32], index: 9, kind: input, shape index: {}]
  %s10 = inlined_call_operand.vmem [shape: f32[1,32], index: 10, kind: input, shape index: {}]
  %s11 = inlined_call_operand.hbm [shape: f32[32,32], index: 11, kind: output, shape index: {0}]
  %s12 = inlined_call_operand.hbm [shape: bf16[4,4,8,8], index: 12, kind: output, shape index: {1}]
  %13 = xla_tuple %s11, %s12
  %s14 = sld [smem:[#allocation0]]
  $region109: #{tpu_custom_call.1} parent=0
    _
  %s16 = ssub.s32 1, %s14
  %s17 = scalar_select 0, %s16, %s14
  $region1: #{tpu_custom_call.1} parent=0
    #allocation3 [shape = 'u8[8192]{0}', space=vmem, size = 0x2000, scoped, tag = 'input window, operand 0']
    #allocation4 [shape = 's32[2]{0}', space=sflag, size = 0x8, scoped, tag = 'scoped memory for tpu_custom_call.1']
    #allocation5 [shape = 's32[2]{0}', space=sflag, size = 0x8, scoped, tag = 'scoped memory for tpu_custom_call.1']
    #allocation6 [shape = 'u8[8192]{0}', space=vmem, size = 0x2000, scoped, tag = 'input window, operand 1']
    #allocation7 [shape = 's32[2]{0}', space=sflag, size = 0x8, scoped, tag = 'scoped memory for tpu_custom_call.1']
    #allocation8 [shape = 'u8[8192]{0}', space=vmem, size = 0x2000, scoped, tag = 'input window, operand 2']
    #allocation9 [shape = 'u8[8192]{0}', space=vmem, size = 0x2000, scoped, tag = 'input window, operand 3, single buffered']
    #allocation10 [shape = 's32[1]{0}', space=sflag, size = 0x4, scoped, tag = 'scoped memory for tpu_custom_call.1']
    #allocation11 [shape = 'u8[8192]{0}', space=vmem, size = 0x2000, scoped, tag = 'input window, operand 4, single buffered']
    #allocation12 [shape = 'u8[512]{0}', space=vmem, size = 0x400, scoped, tag = 'input window, operand 8, single buffered']
    #allocation13 [shape = 's32[1]{0}', space=sflag, size = 0x4, scoped, tag = 'scoped memory for tpu_custom_call.1']
    #allocation14 [shape = 'u8[16384]{0}', space=vmem, size = 0x4000, scoped, tag = 'output window, operand 0']
    #allocation15 [shape = 'u8[32768]{0}', space=vmem, size = 0x8000, scoped, tag = 'output window, operand 1']
    #allocation16 [shape = 's32[2]{0}', space=sflag, size = 0x8, scoped, tag = 'scoped memory for tpu_custom_call.1']
    %18 = vsyncpa [#allocation4], 0
    %s19 = scalar_lea.sflag [#allocation4], 1
    %20 = vsyncpa %s19, 0
    %21 = vsyncpa [#allocation7], 0
    %s22 = scalar_lea.sflag [#allocation7], 1
    %23 = vsyncpa %s22, 0
    %24 = vsyncpa [#allocation10], 0
    %25 = vsyncpa [#allocation13], 0
    %26 = vsyncpa [#allocation5], 0
    %s27 = scalar_lea.sflag [#allocation5], 1
    %28 = vsyncpa %s27, 0
    %29 = vsyncpa [#allocation16], 0
    %s30 = scalar_lea.sflag [#allocation16], 1
    %31 = vsyncpa %s30, 0
    loop: start=0, step=1, limit=4
    $region2: #{tpu_custom_call.1} parent=1 // loop_pre_header
      _
    $region3: #{tpu_custom_call.1} parent=1 // loop_header
      %s33 = sphi 0, %s37
      %p34 = scmp.ge.s32.totalorder %s33, 4
      %s43 = sphi 0, %s45
      %s46 = sphi 0, %s43
      %s47 = sphi 0, %s46
      %s63 = sphi 0, %s47
      %s69 = sphi 0, %s71
      %s72 = sphi 0, %s69
      %s73 = sphi 0, %s72
      %s89 = sphi 0, %s73
      %s95 = sphi 0, %s97
      %s98 = sphi 0, %s95
      %s99 = sphi 0, %s98
      %s115 = sphi 0, %s99
      %s119 = sphi 0, %s119
      %s121 = sphi 0, %s119
      %s122 = sphi 0, %s121
      %s136 = sphi 0, %s122
      %s140 = sphi 0, %s140
      %s142 = sphi 0, %s140
      %s143 = sphi 0, %s142
      %s157 = sphi 0, %s143
      %s161 = sphi 0, %s161
      %s163 = sphi 0, %s161
      %s164 = sphi 0, %s163
      %s178 = sphi 0, %s164
      %s182 = sphi 0, %s182
      %s184 = sphi 0, %s182
      %s185 = sphi 0, %s184
      %s199 = sphi 0, %s185
      %s203 = sphi 0, %s203
      %s205 = sphi 0, %s203
      %s206 = sphi 0, %s205
      %s220 = sphi 0, %s206
      %s224 = sphi 0, %s224
      %s226 = sphi 0, %s224
      %s227 = sphi 0, %s226
      %s241 = sphi 0, %s227
      %s245 = sphi 0, %s245
      %s247 = sphi 0, %s245
      %s248 = sphi 0, %s247
      %s262 = sphi 0, %s248
      %s266 = sphi 0, %s266
      %s268 = sphi 0, %s266
      %s269 = sphi 0, %s268
      %s283 = sphi 0, %s269
      %s289 = sphi 0, %s291
      %s292 = sphi 0, %s289
      %s293 = sphi 0, %s292
      %s309 = sphi 0, %s293
      %s315 = sphi 0, %s317
      %s318 = sphi 0, %s315
      %s319 = sphi 0, %s318
      %s335 = sphi 0, %s319
    $region4: #{tpu_custom_call.1} parent=1 // loop_header_branch
      %36 = sbr.rel (%p34) target = $region8
    $region5: #{tpu_custom_call.1} parent=1 // loop_body
      %s38 = ssub.s32 %s33, 1
      %s39 = ssub.s32 %s33, 2
      %s40 = sadd.s32 %s33, 1
      %s41 = ssub.s32 %s33, %s40
      %p42 = scmp.eq.s32.totalorder %s41, 0
      %s44 = sadd.s32 %s43, 1
      %s45 = scalar_select %p42, %s43, %s44
      %p48 = pneg %p42
      %p49 = scmp.eq.s32.totalorder %s33, 1
      %p50 = por %p48, %p49
      %p51 = scmp.ne.s32.totalorder %s43, %s46
      %p52 = scmp.eq.s32.totalorder %s33, 0
      %p53 = por %p51, %p52
      %p54 = scmp.ne.s32.totalorder %s43, %s46
      %p55 = scmp.eq.s32.totalorder %s38, 1
      %p56 = por %p54, %p55
      %p57 = scmp.ne.s32.totalorder %s46, %s47
      %p58 = scmp.eq.s32.totalorder %s38, 0
      %p59 = por %p57, %p58
      %p60 = scmp.ne.s32.totalorder %s46, %s47
      %p61 = scmp.eq.s32.totalorder %s39, 1
      %p62 = por %p60, %p61
      %p64 = scmp.ne.s32.totalorder %s47, %s63
      %p65 = scmp.eq.s32.totalorder %s39, 0
      %p66 = por %p64, %p65
      %s67 = ssub.s32 %s33, %s40
      %p68 = scmp.eq.s32.totalorder %s67, 0
      %s70 = sadd.s32 %s69, 1
      %s71 = scalar_select %p68, %s69, %s70
      %p74 = pneg %p68
      %p75 = scmp.eq.s32.totalorder %s33, 1
      %p76 = por %p74, %p75
      %p77 = scmp.ne.s32.totalorder %s69, %s72
      %p78 = scmp.eq.s32.totalorder %s33, 0
      %p79 = por %p77, %p78
      %p80 = scmp.ne.s32.totalorder %s69, %s72
      %p81 = scmp.eq.s32.totalorder %s38, 1
      %p82 = por %p80, %p81
      %p83 = scmp.ne.s32.totalorder %s72, %s73
      %p84 = scmp.eq.s32.totalorder %s38, 0
      %p85 = por %p83, %p84
      %p86 = scmp.ne.s32.totalorder %s72, %s73
      %p87 = scmp.eq.s32.totalorder %s39, 1
      %p88 = por %p86, %p87
      %p90 = scmp.ne.s32.totalorder %s73, %s89
      %p91 = scmp.eq.s32.totalorder %s39, 0
      %p92 = por %p90, %p91
      %s93 = ssub.s32 %s33, %s40
      %p94 = scmp.eq.s32.totalorder %s93, 0
      %s96 = sadd.s32 %s95, 1
      %s97 = scalar_select %p94, %s95, %s96
      %p100 = pneg %p94
      %p101 = scmp.eq.s32.totalorder %s33, 1
      %p102 = por %p100, %p101
      %p103 = scmp.ne.s32.totalorder %s95, %s98
      %p104 = scmp.eq.s32.totalorder %s33, 0
      %p105 = por %p103, %p104
      %p106 = scmp.ne.s32.totalorder %s95, %s98
      %p107 = scmp.eq.s32.totalorder %s38, 1
      %p108 = por %p106, %p107
      %p109 = scmp.ne.s32.totalorder %s98, %s99
      %p110 = scmp.eq.s32.totalorder %s38, 0
      %p111 = por %p109, %p110
      %p112 = scmp.ne.s32.totalorder %s98, %s99
      %p113 = scmp.eq.s32.totalorder %s39, 1
      %p114 = por %p112, %p113
      %p116 = scmp.ne.s32.totalorder %s99, %s115
      %p117 = scmp.eq.s32.totalorder %s39, 0
      %p118 = por %p116, %p117
      %s120 = sadd.s32 %s119, 1
      %p123 = scmp.eq.s32.totalorder %s33, 1
      %p124 = scmp.ne.s32.totalorder %s119, %s121
      %p125 = scmp.eq.s32.totalorder %s33, 0
      %p126 = por %p124, %p125
      %p127 = scmp.ne.s32.totalorder %s119, %s121
      %p128 = scmp.eq.s32.totalorder %s38, 1
      %p129 = por %p127, %p128
      %p130 = scmp.ne.s32.totalorder %s121, %s122
      %p131 = scmp.eq.s32.totalorder %s38, 0
      %p132 = por %p130, %p131
      %p133 = scmp.ne.s32.totalorder %s121, %s122
      %p134 = scmp.eq.s32.totalorder %s39, 1
      %p135 = por %p133, %p134
      %p137 = scmp.ne.s32.totalorder %s122, %s136
      %p138 = scmp.eq.s32.totalorder %s39, 0
      %p139 = por %p137, %p138
      %s141 = sadd.s32 %s140, 1
      %p144 = scmp.eq.s32.totalorder %s33, 1
      %p145 = scmp.ne.s32.totalorder %s140, %s142
      %p146 = scmp.eq.s32.totalorder %s33, 0
      %p147 = por %p145, %p146
      %p148 = scmp.ne.s32.totalorder %s140, %s142
      %p149 = scmp.eq.s32.totalorder %s38, 1
      %p150 = por %p148, %p149
      %p151 = scmp.ne.s32.totalorder %s142, %s143
      %p152 = scmp.eq.s32.totalorder %s38, 0
      %p153 = por %p151, %p152
      %p154 = scmp.ne.s32.totalorder %s142, %s143
      %p155 = scmp.eq.s32.totalorder %s39, 1
      %p156 = por %p154, %p155
      %p158 = scmp.ne.s32.totalorder %s143, %s157
      %p159 = scmp.eq.s32.totalorder %s39, 0
      %p160 = por %p158, %p159
      %s162 = sadd.s32 %s161, 1
      %p165 = scmp.eq.s32.totalorder %s33, 1
      %p166 = scmp.ne.s32.totalorder %s161, %s163
      %p167 = scmp.eq.s32.totalorder %s33, 0
      %p168 = por %p166, %p167
      %p169 = scmp.ne.s32.totalorder %s161, %s163
      %p170 = scmp.eq.s32.totalorder %s38, 1
      %p171 = por %p169, %p170
      %p172 = scmp.ne.s32.totalorder %s163, %s164
      %p173 = scmp.eq.s32.totalorder %s38, 0
      %p174 = por %p172, %p173
      %p175 = scmp.ne.s32.totalorder %s163, %s164
      %p176 = scmp.eq.s32.totalorder %s39, 1
      %p177 = por %p175, %p176
      %p179 = scmp.ne.s32.totalorder %s164, %s178
      %p180 = scmp.eq.s32.totalorder %s39, 0
      %p181 = por %p179, %p180
      %s183 = sadd.s32 %s182, 1
      %p186 = scmp.eq.s32.totalorder %s33, 1
      %p187 = scmp.ne.s32.totalorder %s182, %s184
      %p188 = scmp.eq.s32.totalorder %s33, 0
      %p189 = por %p187, %p188
      %p190 = scmp.ne.s32.totalorder %s182, %s184
      %p191 = scmp.eq.s32.totalorder %s38, 1
      %p192 = por %p190, %p191
      %p193 = scmp.ne.s32.totalorder %s184, %s185
      %p194 = scmp.eq.s32.totalorder %s38, 0
      %p195 = por %p193, %p194
      %p196 = scmp.ne.s32.totalorder %s184, %s185
      %p197 = scmp.eq.s32.totalorder %s39, 1
      %p198 = por %p196, %p197
      %p200 = scmp.ne.s32.totalorder %s185, %s199
      %p201 = scmp.eq.s32.totalorder %s39, 0
      %p202 = por %p200, %p201
      %s204 = sadd.s32 %s203, 1
      %p207 = scmp.eq.s32.totalorder %s33, 1
      %p208 = scmp.ne.s32.totalorder %s203, %s205
      %p209 = scmp.eq.s32.totalorder %s33, 0
      %p210 = por %p208, %p209
      %p211 = scmp.ne.s32.totalorder %s203, %s205
      %p212 = scmp.eq.s32.totalorder %s38, 1
      %p213 = por %p211, %p212
      %p214 = scmp.ne.s32.totalorder %s205, %s206
      %p215 = scmp.eq.s32.totalorder %s38, 0
      %p216 = por %p214, %p215
      %p217 = scmp.ne.s32.totalorder %s205, %s206
      %p218 = scmp.eq.s32.totalorder %s39, 1
      %p219 = por %p217, %p218
      %p221 = scmp.ne.s32.totalorder %s206, %s220
      %p222 = scmp.eq.s32.totalorder %s39, 0
      %p223 = por %p221, %p222
      %s225 = sadd.s32 %s224, 1
      %p228 = scmp.eq.s32.totalorder %s33, 1
      %p229 = scmp.ne.s32.totalorder %s224, %s226
      %p230 = scmp.eq.s32.totalorder %s33, 0
      %p231 = por %p229, %p230
      %p232 = scmp.ne.s32.totalorder %s224, %s226
      %p233 = scmp.eq.s32.totalorder %s38, 1
      %p234 = por %p232, %p233
      %p235 = scmp.ne.s32.totalorder %s226, %s227
      %p236 = scmp.eq.s32.totalorder %s38, 0
      %p237 = por %p235, %p236
      %p238 = scmp.ne.s32.totalorder %s226, %s227
      %p239 = scmp.eq.s32.totalorder %s39, 1
      %p240 = por %p238, %p239
      %p242 = scmp.ne.s32.totalorder %s227, %s241
      %p243 = scmp.eq.s32.totalorder %s39, 0
      %p244 = por %p242, %p243
      %s246 = sadd.s32 %s245, 1
      %p249 = scmp.eq.s32.totalorder %s33, 1
      %p250 = scmp.ne.s32.totalorder %s245, %s247
      %p251 = scmp.eq.s32.totalorder %s33, 0
      %p252 = por %p250, %p251
      %p253 = scmp.ne.s32.totalorder %s245, %s247
      %p254 = scmp.eq.s32.totalorder %s38, 1
      %p255 = por %p253, %p254
      %p256 = scmp.ne.s32.totalorder %s247, %s248
      %p257 = scmp.eq.s32.totalorder %s38, 0
      %p258 = por %p256, %p257
      %p259 = scmp.ne.s32.totalorder %s247, %s248
      %p260 = scmp.eq.s32.totalorder %s39, 1
      %p261 = por %p259, %p260
      %p263 = scmp.ne.s32.totalorder %s248, %s262
      %p264 = scmp.eq.s32.totalorder %s39, 0
      %p265 = por %p263, %p264
      %s267 = sadd.s32 %s266, 1
      %p270 = scmp.eq.s32.totalorder %s33, 1
      %p271 = scmp.ne.s32.totalorder %s266, %s268
      %p272 = scmp.eq.s32.totalorder %s33, 0
      %p273 = por %p271, %p272
      %p274 = scmp.ne.s32.totalorder %s266, %s268
      %p275 = scmp.eq.s32.totalorder %s38, 1
      %p276 = por %p274, %p275
      %p277 = scmp.ne.s32.totalorder %s268, %s269
      %p278 = scmp.eq.s32.totalorder %s38, 0
      %p279 = por %p277, %p278
      %p280 = scmp.ne.s32.totalorder %s268, %s269
      %p281 = scmp.eq.s32.totalorder %s39, 1
      %p282 = por %p280, %p281
      %p284 = scmp.ne.s32.totalorder %s269, %s283
      %p285 = scmp.eq.s32.totalorder %s39, 0
      %p286 = por %p284, %p285
      %s287 = ssub.s32 %s33, %s40
      %p288 = scmp.eq.s32.totalorder %s287, 0
      %s290 = sadd.s32 %s289, 1
      %s291 = scalar_select %p288, %s289, %s290
      %p294 = pneg %p288
      %p295 = scmp.eq.s32.totalorder %s33, 1
      %p296 = por %p294, %p295
      %p297 = scmp.ne.s32.totalorder %s289, %s292
      %p298 = scmp.eq.s32.totalorder %s33, 0
      %p299 = por %p297, %p298
      %p300 = scmp.ne.s32.totalorder %s289, %s292
      %p301 = scmp.eq.s32.totalorder %s38, 1
      %p302 = por %p300, %p301
      %p303 = scmp.ne.s32.totalorder %s292, %s293
      %p304 = scmp.eq.s32.totalorder %s38, 0
      %p305 = por %p303, %p304
      %p306 = scmp.ne.s32.totalorder %s292, %s293
      %p307 = scmp.eq.s32.totalorder %s39, 1
      %p308 = por %p306, %p307
      %p310 = scmp.ne.s32.totalorder %s293, %s309
      %p311 = scmp.eq.s32.totalorder %s39, 0
      %p312 = por %p310, %p311
      %s313 = ssub.s32 %s33, %s40
      %p314 = scmp.eq.s32.totalorder %s313, 0
      %s316 = sadd.s32 %s315, 1
      %s317 = scalar_select %p314, %s315, %s316
      %p320 = pneg %p314
      %p321 = scmp.eq.s32.totalorder %s33, 1
      %p322 = por %p320, %p321
      %p323 = scmp.ne.s32.totalorder %s315, %s318
      %p324 = scmp.eq.s32.totalorder %s33, 0
      %p325 = por %p323, %p324
      %p326 = scmp.ne.s32.totalorder %s315, %s318
      %p327 = scmp.eq.s32.totalorder %s38, 1
      %p328 = por %p326, %p327
      %p329 = scmp.ne.s32.totalorder %s318, %s319
      %p330 = scmp.eq.s32.totalorder %s38, 0
      %p331 = por %p329, %p330
      %p332 = scmp.ne.s32.totalorder %s318, %s319
      %p333 = scmp.eq.s32.totalorder %s39, 1
      %p334 = por %p332, %p333
      %p336 = scmp.ne.s32.totalorder %s319, %s335
      %p337 = scmp.eq.s32.totalorder %s39, 0
      %p338 = por %p336, %p337
      %p339 = scmp.le.s32.totalorder 1, %s33
      %p340 = scmp.lt.s32.totalorder %s33, 3
      %p341 = pnand %p339, %p340
      %p342 = pneg %p341
      // Predicated region
      $region9: #{tpu_custom_call.1} parent=5 // pred_check
        _
      $region10: #{tpu_custom_call.1} parent=5 // pred_check_branch
        %344 = sbr.rel (%p341) target = $region12
      $region11: #{tpu_custom_call.1} parent=5 // pred_region
        %s345 = ssub.s32 %s33, 1
        // Predicated region
        $region13: #{tpu_custom_call.1} parent=11 // pred_check
          %p346 = pneg %p132
        $region14: #{tpu_custom_call.1} parent=11 // pred_check_branch
          %348 = sbr.rel (%p346) target = $region16
        $region15: #{tpu_custom_call.1} parent=11 // pred_region
          %s350 = ssub.s32 256, 256
          %351 = vsyncadd [#allocation10], %s350
          %s352 = sshll.u32 [#allocation9], 4
          %s353 = int_to_ptr.vmem [resolvable:$true] %s352
          %358 = dma.hbm_to_vmem [thread:$0]  %s3, 256, %s353, [#allocation10], 64, 64, 4
        $region16: #{tpu_custom_call.1} parent=11 // pred_fallthru
          _
        // Predicated region
        $region17: #{tpu_custom_call.1} parent=11 // pred_check
          %p359 = pneg %p153
        $region18: #{tpu_custom_call.1} parent=11 // pred_check_branch
          %361 = sbr.rel (%p359) target = $region20
        $region19: #{tpu_custom_call.1} parent=11 // pred_region
          %s363 = ssub.s32 256, 256
          %364 = vsyncadd [#allocation10], %s363
          %s365 = sshll.u32 [#allocation11], 4
          %s366 = int_to_ptr.vmem [resolvable:$true] %s365
          %371 = dma.hbm_to_vmem [thread:$0]  %s4, 256, %s366, [#allocation10], 64, 64, 4
        $region20: #{tpu_custom_call.1} parent=11 // pred_fallthru
          _
        // Predicated region
        $region21: #{tpu_custom_call.1} parent=11 // pred_check
          %p372 = pneg %p174
        $region22: #{tpu_custom_call.1} parent=11 // pred_check_branch
          %374 = sbr.rel (%p372) target = $region24
        $region23: #{tpu_custom_call.1} parent=11 // pred_region
          _
        $region24: #{tpu_custom_call.1} parent=11 // pred_fallthru
          _
        // Predicated region
        $region25: #{tpu_custom_call.1} parent=11 // pred_check
          %p375 = pneg %p195
        $region26: #{tpu_custom_call.1} parent=11 // pred_check_branch
          %377 = sbr.rel (%p375) target = $region28
        $region27: #{tpu_custom_call.1} parent=11 // pred_region
          _
        $region28: #{tpu_custom_call.1} parent=11 // pred_fallthru
          _
        // Predicated region
        $region29: #{tpu_custom_call.1} parent=11 // pred_check
          %p378 = pneg %p216
        $region30: #{tpu_custom_call.1} parent=11 // pred_check_branch
          %380 = sbr.rel (%p378) target = $region32
        $region31: #{tpu_custom_call.1} parent=11 // pred_region
          _
        $region32: #{tpu_custom_call.1} parent=11 // pred_fallthru
          _
        // Predicated region
        $region33: #{tpu_custom_call.1} parent=11 // pred_check
          %p381 = pneg %p237
        $region34: #{tpu_custom_call.1} parent=11 // pred_check_branch
          %383 = sbr.rel (%p381) target = $region36
        $region35: #{tpu_custom_call.1} parent=11 // pred_region
          %s385 = ssub.s32 16, 16
          %386 = vsyncadd [#allocation13], %s385
          %s388 = sshll.u32 [#allocation12], 4
          %s389 = int_to_ptr.vmem [resolvable:$true] %s388
          %391 = dma.hbm_to_vmem [thread:$0]  %s8, 16, %s389, [#allocation13]
        $region36: #{tpu_custom_call.1} parent=11 // pred_fallthru
          _
        // Predicated region
        $region37: #{tpu_custom_call.1} parent=11 // pred_check
          %p392 = pneg %p258
        $region38: #{tpu_custom_call.1} parent=11 // pred_check_branch
          %394 = sbr.rel (%p392) target = $region40
        $region39: #{tpu_custom_call.1} parent=11 // pred_region
          _
        $region40: #{tpu_custom_call.1} parent=11 // pred_fallthru
          _
        // Predicated region
        $region41: #{tpu_custom_call.1} parent=11 // pred_check
          %p395 = pneg %p279
        $region42: #{tpu_custom_call.1} parent=11 // pred_check_branch
          %397 = sbr.rel (%p395) target = $region44
        $region43: #{tpu_custom_call.1} parent=11 // pred_region
          _
        $region44: #{tpu_custom_call.1} parent=11 // pred_fallthru
          _
      $region12: #{tpu_custom_call.1} parent=5 // pred_fallthru
        _
      %p398 = scmp.lt.s32.totalorder %s33, 2
      // Predicated region
      $region45: #{tpu_custom_call.1} parent=5 // pred_check
        %p399 = pneg %p398
      $region46: #{tpu_custom_call.1} parent=5 // pred_check_branch
        %401 = sbr.rel (%p399) target = $region48
      $region47: #{tpu_custom_call.1} parent=5 // pred_region
        // Predicated region
        $region49: #{tpu_custom_call.1} parent=47 // pred_check
          %p402 = pneg %p53
        $region50: #{tpu_custom_call.1} parent=47 // pred_check_branch
          %404 = sbr.rel (%p402) target = $region52
        $region51: #{tpu_custom_call.1} parent=47 // pred_region
          %s405 = sand.u32 %s43, 1
          %s406 = scalar_lea.sflag [#allocation4], %s405
          %s407 = sand.u32 %s43, 1
          %s408 = smul.addr %s407, 8
          %s409 = scalar_lea.vmem [#allocation3], %s408
          %s410 = smul.u32 2, %s33
          %s412 = ssub.s32 128, 128
          %413 = vsyncadd %s406, %s412
          %s414 = smul.addr %s410, 64
          %s415 = scalar_lea.hbm %s0, %s414
          %s416 = sshll.u32 %s409, 4
          %s417 = int_to_ptr.vmem [resolvable:$true] %s416
          %422 = dma.hbm_to_vmem [thread:$0]  %s415, 128, %s417, %s406, 64, 64, 4
        $region52: #{tpu_custom_call.1} parent=47 // pred_fallthru
          _
        // Predicated region
        $region53: #{tpu_custom_call.1} parent=47 // pred_check
          %p423 = pneg %p79
        $region54: #{tpu_custom_call.1} parent=47 // pred_check_branch
          %425 = sbr.rel (%p423) target = $region56
        $region55: #{tpu_custom_call.1} parent=47 // pred_region
          %s426 = sand.u32 %s33, 1
          %s427 = scalar_lea.sflag [#allocation7], %s426
          %s428 = sand.u32 %s69, 1
          %s429 = smul.addr %s428, 8
          %s430 = scalar_lea.vmem [#allocation6], %s429
          %s431 = smul.u32 2, %s33
          %s433 = ssub.s32 128, 128
          %434 = vsyncadd %s427, %s433
          %s435 = smul.addr %s431, 64
          %s436 = scalar_lea.hbm %s1, %s435
          %s437 = sshll.u32 %s430, 4
          %s438 = int_to_ptr.vmem [resolvable:$true] %s437
          %443 = dma.hbm_to_vmem [thread:$0]  %s436, 128, %s438, %s427, 64, 64, 4
        $region56: #{tpu_custom_call.1} parent=47 // pred_fallthru
          _
        // Predicated region
        $region57: #{tpu_custom_call.1} parent=47 // pred_check
          %p444 = pneg %p105
        $region58: #{tpu_custom_call.1} parent=47 // pred_check_branch
          %446 = sbr.rel (%p444) target = $region60
        $region59: #{tpu_custom_call.1} parent=47 // pred_region
          %s447 = sand.u32 %s33, 1
          %s448 = scalar_lea.sflag [#allocation7], %s447
          %s449 = sand.u32 %s95, 1
          %s450 = smul.addr %s449, 8
          %s451 = scalar_lea.vmem [#allocation8], %s450
          %s452 = smul.u32 2, %s33
          %s454 = ssub.s32 128, 128
          %455 = vsyncadd %s448, %s454
          %s456 = smul.addr %s452, 64
          %s457 = scalar_lea.hbm %s2, %s456
          %s458 = sshll.u32 %s451, 4
          %s459 = int_to_ptr.vmem [resolvable:$true] %s458
          %464 = dma.hbm_to_vmem [thread:$0]  %s457, 128, %s459, %s448, 64, 64, 4
        $region60: #{tpu_custom_call.1} parent=47 // pred_fallthru
          _
      $region48: #{tpu_custom_call.1} parent=5 // pred_fallthru
        _
      %p465 = scmp.le.s32.totalorder 1, %s33
      %p466 = scmp.lt.s32.totalorder %s33, 3
      %p467 = pnand %p465, %p466
      %p468 = pneg %p467
      // Predicated region
      $region61: #{tpu_custom_call.1} parent=5 // pred_check
        _
      $region62: #{tpu_custom_call.1} parent=5 // pred_check_branch
        %470 = sbr.rel (%p467) target = $region64
      $region63: #{tpu_custom_call.1} parent=5 // pred_region
        %s471 = ssub.s32 %s33, 1
        %s472 = sand.u32 %s46, 1
        %s473 = scalar_lea.sflag [#allocation4], %s472
        %s474 = sand.u32 %s46, 1
        %s475 = smul.addr %s474, 8
        %s476 = scalar_lea.vmem [#allocation3], %s475
        // Predicated region
        $region65: #{tpu_custom_call.1} parent=63 // pred_check
          %p477 = pneg %p59
        $region66: #{tpu_custom_call.1} parent=63 // pred_check_branch
          %479 = sbr.rel (%p477) target = $region68
        $region67: #{tpu_custom_call.1} parent=63 // pred_region
          %480 = dma.done %s473, 128
        $region68: #{tpu_custom_call.1} parent=63 // pred_fallthru
          _
        %s481 = sand.u32 %s38, 1
        %s482 = scalar_lea.sflag [#allocation7], %s481
        %s483 = sand.u32 %s72, 1
        %s484 = smul.addr %s483, 8
        %s485 = scalar_lea.vmem [#allocation6], %s484
        // Predicated region
        $region69: #{tpu_custom_call.1} parent=63 // pred_check
          %p486 = pneg %p85
        $region70: #{tpu_custom_call.1} parent=63 // pred_check_branch
          %488 = sbr.rel (%p486) target = $region72
        $region71: #{tpu_custom_call.1} parent=63 // pred_region
          %489 = dma.done %s482, 128
        $region72: #{tpu_custom_call.1} parent=63 // pred_fallthru
          _
        %s490 = sand.u32 %s38, 1
        %s491 = scalar_lea.sflag [#allocation7], %s490
        %s492 = sand.u32 %s98, 1
        %s493 = smul.addr %s492, 8
        %s494 = scalar_lea.vmem [#allocation8], %s493
        // Predicated region
        $region73: #{tpu_custom_call.1} parent=63 // pred_check
          %p495 = pneg %p111
        $region74: #{tpu_custom_call.1} parent=63 // pred_check_branch
          %497 = sbr.rel (%p495) target = $region76
        $region75: #{tpu_custom_call.1} parent=63 // pred_region
          %498 = dma.done %s491, 128
        $region76: #{tpu_custom_call.1} parent=63 // pred_fallthru
          _
        // Predicated region
        $region77: #{tpu_custom_call.1} parent=63 // pred_check
          %p499 = pneg %p132
        $region78: #{tpu_custom_call.1} parent=63 // pred_check_branch
          %501 = sbr.rel (%p499) target = $region80
        $region79: #{tpu_custom_call.1} parent=63 // pred_region
          %502 = dma.done [#allocation10], 256
        $region80: #{tpu_custom_call.1} parent=63 // pred_fallthru
          _
        // Predicated region
        $region81: #{tpu_custom_call.1} parent=63 // pred_check
          %p503 = pneg %p153
        $region82: #{tpu_custom_call.1} parent=63 // pred_check_branch
          %505 = sbr.rel (%p503) target = $region84
        $region83: #{tpu_custom_call.1} parent=63 // pred_region
          %506 = dma.done [#allocation10], 256
        $region84: #{tpu_custom_call.1} parent=63 // pred_fallthru
          _
        // Predicated region
        $region85: #{tpu_custom_call.1} parent=63 // pred_check
          %p507 = pneg %p237
        $region86: #{tpu_custom_call.1} parent=63 // pred_check_branch
          %509 = sbr.rel (%p507) target = $region88
        $region87: #{tpu_custom_call.1} parent=63 // pred_region
          %510 = dma.done [#allocation13], 16
        $region88: #{tpu_custom_call.1} parent=63 // pred_fallthru
          _
        %s511 = sand.u32 %s46, 1
        %s512 = scalar_lea.sflag [#allocation4], %s511
        %s513 = sand.u32 %s46, 1
        %s514 = smul.addr %s513, 8
        %s515 = scalar_lea.vmem [#allocation3], %s514
        %p516 = pneg %p59
        %p517 = pneg %p56
        %s518 = sand.u32 %s38, 1
        %s519 = scalar_lea.sflag [#allocation7], %s518
        %s520 = sand.u32 %s72, 1
        %s521 = smul.addr %s520, 8
        %s522 = scalar_lea.vmem [#allocation6], %s521
        %p523 = pneg %p85
        %p524 = pneg %p82
        %s525 = sand.u32 %s38, 1
        %s526 = scalar_lea.sflag [#allocation7], %s525
        %s527 = sand.u32 %s98, 1
        %s528 = smul.addr %s527, 8
        %s529 = scalar_lea.vmem [#allocation8], %s528
        %p530 = pneg %p111
        %p531 = pneg %p108
        %p532 = pneg %p132
        %p533 = pneg %p129
        %p534 = pneg %p153
        %p535 = pneg %p150
        %p536 = pneg %p174
        %p537 = pneg %p171
        %p538 = pneg %p195
        %p539 = pneg %p192
        %p540 = pneg %p216
        %p541 = pneg %p213
        %p542 = pneg %p237
        %p543 = pneg %p234
        %p544 = pneg %p258
        %p545 = pneg %p255
        %p546 = pneg %p279
        %p547 = pneg %p276
        %p548 = pneg %p305
        %p549 = pneg %p302
        %s550 = sand.u32 %s292, 1
        %s551 = scalar_lea.sflag [#allocation5], %s550
        %s552 = sand.u32 %s292, 1
        %s553 = smul.addr %s552, 16
        %s554 = scalar_lea.vmem [#allocation14], %s553
        %p555 = pneg %p331
        %p556 = pneg %p328
        %s557 = sand.u32 %s318, 1
        %s558 = scalar_lea.sflag [#allocation16], %s557
        %s559 = sand.u32 %s318, 1
        %s560 = smul.addr %s559, 32
        %s561 = scalar_lea.vmem [#allocation15], %s560
        %s562 = smul.u32 2, %s38
        %s563 = smul.u32 2, %s38
        %s564 = smul.u32 2, %s38
        %s565 = smul.u32 2, %s38
        %s566 = smul.u32 2, %s38
        %v568 = vld [vmem:[%s476] sm:$0xf]
        %v569 = vld [vmem:[%s476 + $0x4] sm:$0xf]
        %v570 = vld [vmem:[#allocation9] sm:$0xf]
        %v571 = vld [vmem:[#allocation9 + $0x4] sm:$0xf]
        %v572 = vld [vmem:[#allocation9 + $0x8] sm:$0xf]
        %v573 = vld [vmem:[#allocation9 + $0xc] sm:$0xf]
        %v574 = vld [vmem:[%s6] sm:$0x1]
        %v576 = vlaneseq
        %v577 = vshrl.u32 %v576, 7
        %v578 = vsub.s32 0, %v577
        %v579 = vrot.slane %v574, %v578
        %v583 = vunpack.c.l.b16 %v568
        %v584 = vunpack.c.l.b16 %v569
        %v585 = vpack.c.b16 %v584, %v583
        %v590 = vunpack.c.l.b16 %v570
        %v591 = vunpack.c.l.b16 %v571
        %v592 = vunpack.c.l.b16 %v572
        %v593 = vunpack.c.l.b16 %v573
        %v594 = vpack.c.b16 %v591, %v590
        %v595 = vpack.c.b16 %v593, %v592
        %vm598 = vcmask 261120
        %v600 = vsel %vm598, %v585, 0
        %602 = vmatprep.subr.bf16.mxu0 0
        %603 = vmatpush1.bf16.msra.mxu0 %v594
        %604 = vmatprep.subr.bf16.mxu0 0
        %605 = vmatpush1.bf16.msra.mxu0 %v595
        %606 = vmatprep.subr.bf16.mxu0 0
        %607 = vmatpush1.bf16.msra.mxu0 0
        %608 = vmatprep.subr.bf16.mxu0 0
        %609 = vmatpush1.bf16.msra.mxu0 0
        %610 = vmatprep.subr.bf16.mxu0 0
        %611 = vmatpush1.bf16.msra.mxu0 0
        %612 = vmatprep.subr.bf16.mxu0 0
        %613 = vmatpush1.bf16.msra.mxu0 0
        %614 = vmatprep.subr.bf16.mxu0 0
        %615 = vmatpush1.bf16.msra.mxu0 0
        %616 = vmatprep.subr.bf16.mxu0 0
        %617 = vmatpush1.bf16.msra.mxu0 0
        %618 = vmatprep.subr.bf16.mxu0 0
        %619 = vmatpush1.bf16.msra.mxu0 0
        %620 = vmatprep.subr.bf16.mxu0 0
        %621 = vmatpush1.bf16.msra.mxu0 0
        %622 = vmatprep.subr.bf16.mxu0 0
        %623 = vmatpush1.bf16.msra.mxu0 0
        %624 = vmatprep.subr.bf16.mxu0 0
        %625 = vmatpush1.bf16.msra.mxu0 0
        %626 = vmatprep.subr.bf16.mxu0 0
        %627 = vmatpush1.bf16.msra.mxu0 0
        %628 = vmatprep.subr.bf16.mxu0 0
        %629 = vmatpush1.bf16.msra.mxu0 0
        %630 = vmatprep.subr.bf16.mxu0 0
        %631 = vmatpush1.bf16.msra.mxu0 0
        %632 = vmatprep.subr.bf16.mxu0 0
        %633 = vmatpush1.bf16.msra.mxu0 0
        %634 = vmatprep.mubr.bf16.mxu0 0
        %635 = vmatmul.mubr.bf16.gmra.mrb[0].mxu0 %v600
        %v636 = vpop.f32.mrb[0].mxu0
        %v637 = vadd.f32 %v579, %v636
        %v638 = vpop.f32.mrb[0].mxu0
        %v639 = vpop.f32.mrb[0].mxu0
        %v640 = vadd.f32 %v579, %v639
        %v641 = vpop.f32.mrb[0].mxu0
        %642 = vdwg.mxu0
        %v643 = vld [vmem:[%s485] sm:$0xf]
        %v644 = vld [vmem:[%s485 + $0x4] sm:$0xf]
        %v645 = vld [vmem:[#allocation11] sm:$0xf]
        %v646 = vld [vmem:[#allocation11 + $0x4] sm:$0xf]
        %v647 = vld [vmem:[#allocation11 + $0x8] sm:$0xf]
        %v648 = vld [vmem:[#allocation11 + $0xc] sm:$0xf]
        %v649 = vld [vmem:[%s7] sm:$0x1]
        %v651 = vlaneseq
        %v652 = vshrl.u32 %v651, 7
        %v653 = vsub.s32 0, %v652
        %v654 = vrot.slane %v649, %v653
        %v658 = vunpack.c.l.b16 %v643
        %v659 = vunpack.c.l.b16 %v644
        %v660 = vpack.c.b16 %v659, %v658
        %v665 = vunpack.c.l.b16 %v645
        %v666 = vunpack.c.l.b16 %v646
        %v667 = vunpack.c.l.b16 %v647
        %v668 = vunpack.c.l.b16 %v648
        %v669 = vpack.c.b16 %v666, %v665
        %v670 = vpack.c.b16 %v668, %v667
        %v674 = vsel %vm598, %v660, 0
        %676 = vmatprep.subr.bf16.mxu0 0
        %677 = vmatpush1.bf16.msra.mxu0 %v669
        %678 = vmatprep.subr.bf16.mxu0 0
        %679 = vmatpush1.bf16.msra.mxu0 %v670
        %680 = vmatprep.subr.bf16.mxu0 0
        %681 = vmatpush1.bf16.msra.mxu0 0
        %682 = vmatprep.subr.bf16.mxu0 0
        %683 = vmatpush1.bf16.msra.mxu0 0
        %684 = vmatprep.subr.bf16.mxu0 0
        %685 = vmatpush1.bf16.msra.mxu0 0
        %686 = vmatprep.subr.bf16.mxu0 0
        %687 = vmatpush1.bf16.msra.mxu0 0
        %688 = vmatprep.subr.bf16.mxu0 0
        %689 = vmatpush1.bf16.msra.mxu0 0
        %690 = vmatprep.subr.bf16.mxu0 0
        %691 = vmatpush1.bf16.msra.mxu0 0
        %692 = vmatprep.subr.bf16.mxu0 0
        %693 = vmatpush1.bf16.msra.mxu0 0
        %694 = vmatprep.subr.bf16.mxu0 0
        %695 = vmatpush1.bf16.msra.mxu0 0
        %696 = vmatprep.subr.bf16.mxu0 0
        %697 = vmatpush1.bf16.msra.mxu0 0
        %698 = vmatprep.subr.bf16.mxu0 0
        %699 = vmatpush1.bf16.msra.mxu0 0
        %700 = vmatprep.subr.bf16.mxu0 0
        %701 = vmatpush1.bf16.msra.mxu0 0
        %702 = vmatprep.subr.bf16.mxu0 0
        %703 = vmatpush1.bf16.msra.mxu0 0
        %704 = vmatprep.subr.bf16.mxu0 0
        %705 = vmatpush1.bf16.msra.mxu0 0
        %706 = vmatprep.subr.bf16.mxu0 0
        %707 = vmatpush1.bf16.msra.mxu0 0
        %708 = vmatprep.mubr.bf16.mxu0 0
        %709 = vmatmul.mubr.bf16.gmra.mrb[0].mxu0 %v674
        %v710 = vpop.f32.mrb[0].mxu0
        %v711 = vadd.f32 %v654, %v710
        %v712 = vpop.f32.mrb[0].mxu0
        %v713 = vpop.f32.mrb[0].mxu0
        %v714 = vadd.f32 %v654, %v713
        %v715 = vpop.f32.mrb[0].mxu0
        %716 = vdwg.mxu0
        %v717 = vld [vmem:[%s494] sm:$0xf]
        %v718 = vld [vmem:[%s494 + $0x4] sm:$0xf]
        %v719 = vld [vmem:[%s5] sm:$0xf]
        %v720 = vld [vmem:[%s5 + $0x4] sm:$0xf]
        %v721 = vld [vmem:[%s5 + $0x8] sm:$0xf]
        %v722 = vld [vmem:[%s5 + $0xc] sm:$0xf]
        %v723 = vld [vmem:[#allocation12] sm:$0x1]
        %v725 = vlaneseq
        %v726 = vshrl.u32 %v725, 7
        %v727 = vsub.s32 0, %v726
        %v728 = vrot.slane %v723, %v727
        %v732 = vunpack.c.l.b16 %v717
        %v733 = vunpack.c.l.b16 %v718
        %v734 = vpack.c.b16 %v733, %v732
        %v739 = vunpack.c.l.b16 %v719
        %v740 = vunpack.c.l.b16 %v720
        %v741 = vunpack.c.l.b16 %v721
        %v742 = vunpack.c.l.b16 %v722
        %v743 = vpack.c.b16 %v740, %v739
        %v744 = vpack.c.b16 %v742, %v741
        %v748 = vsel %vm598, %v734, 0
        %750 = vmatprep.subr.bf16.mxu0 0
        %751 = vmatpush1.bf16.msra.mxu0 %v743
        %752 = vmatprep.subr.bf16.mxu0 0
        %753 = vmatpush1.bf16.msra.mxu0 %v744
        %754 = vmatprep.subr.bf16.mxu0 0
        %755 = vmatpush1.bf16.msra.mxu0 0
        %756 = vmatprep.subr.bf16.mxu0 0
        %757 = vmatpush1.bf16.msra.mxu0 0
        %758 = vmatprep.subr.bf16.mxu0 0
        %759 = vmatpush1.bf16.msra.mxu0 0
        %760 = vmatprep.subr.bf16.mxu0 0
        %761 = vmatpush1.bf16.msra.mxu0 0
        %762 = vmatprep.subr.bf16.mxu0 0
        %763 = vmatpush1.bf16.msra.mxu0 0
        %764 = vmatprep.subr.bf16.mxu0 0
        %765 = vmatpush1.bf16.msra.mxu0 0
        %766 = vmatprep.subr.bf16.mxu0 0
        %767 = vmatpush1.bf16.msra.mxu0 0
        %768 = vmatprep.subr.bf16.mxu0 0
        %769 = vmatpush1.bf16.msra.mxu0 0
        %770 = vmatprep.subr.bf16.mxu0 0
        %771 = vmatpush1.bf16.msra.mxu0 0
        %772 = vmatprep.subr.bf16.mxu0 0
        %773 = vmatpush1.bf16.msra.mxu0 0
        %774 = vmatprep.subr.bf16.mxu0 0
        %775 = vmatpush1.bf16.msra.mxu0 0
        %776 = vmatprep.subr.bf16.mxu0 0
        %777 = vmatpush1.bf16.msra.mxu0 0
        %778 = vmatprep.subr.bf16.mxu0 0
        %779 = vmatpush1.bf16.msra.mxu0 0
        %780 = vmatprep.subr.bf16.mxu0 0
        %781 = vmatpush1.bf16.msra.mxu0 0
        %782 = vmatprep.mubr.bf16.mxu0 0
        %783 = vmatmul.mubr.bf16.gmra.mrb[0].mxu0 %v748
        %v784 = vpop.f32.mrb[0].mxu0
        %v785 = vadd.f32 %v728, %v784
        %v786 = vpop.f32.mrb[0].mxu0
        %v787 = vpop.f32.mrb[0].mxu0
        %v788 = vadd.f32 %v728, %v787
        %v789 = vpop.f32.mrb[0].mxu0
        %790 = vdwg.mxu0
        %vm791 = vcmask 64512
        %v793 = vsel %vm791, %v637, 0
        %v796 = vsel %vm791, %v711, 0
        %798 = vmatprep.subr.mxu0 0.0
        %799 = vmatpush1.xpose.msra.mxu0 %v796
        %800 = vmatprep.subr.mxu0 0.0
        %801 = vmatpush1.xpose.msra.mxu0 0.0
        %802 = vmatprep.subr.mxu0 0.0
        %803 = vmatpush1.xpose.msra.mxu0 0.0
        %804 = vmatprep.subr.mxu0 0.0
        %805 = vmatpush1.xpose.msra.mxu0 0.0
        %806 = vmatprep.subr.mxu0 0.0
        %807 = vmatpush1.xpose.msra.mxu0 0.0
        %808 = vmatprep.subr.mxu0 0.0
        %809 = vmatpush1.xpose.msra.mxu0 0.0
        %810 = vmatprep.subr.mxu0 0.0
        %811 = vmatpush1.xpose.msra.mxu0 0.0
        %812 = vmatprep.subr.mxu0 0.0
        %813 = vmatpush1.xpose.msra.mxu0 0.0
        %814 = vmatprep.subr.mxu0 0.0
        %815 = vmatpush1.xpose.msra.mxu0 0.0
        %816 = vmatprep.subr.mxu0 0.0
        %817 = vmatpush1.xpose.msra.mxu0 0.0
        %818 = vmatprep.subr.mxu0 0.0
        %819 = vmatpush1.xpose.msra.mxu0 0.0
        %820 = vmatprep.subr.mxu0 0.0
        %821 = vmatpush1.xpose.msra.mxu0 0.0
        %822 = vmatprep.subr.mxu0 0.0
        %823 = vmatpush1.xpose.msra.mxu0 0.0
        %824 = vmatprep.subr.mxu0 0.0
        %825 = vmatpush1.xpose.msra.mxu0 0.0
        %826 = vmatprep.subr.mxu0 0.0
        %827 = vmatpush1.xpose.msra.mxu0 0.0
        %828 = vmatprep.subr.mxu0 0.0
        %829 = vmatpush1.xpose.msra.mxu0 0.0
        %830 = vmatprep.subr.mxu0 0.0
        %831 = vmatpush1.xpose.msra.mxu0 0.0
        %832 = vmatprep.subr.mxu0 0.0
        %833 = vmatpush1.xpose.msra.mxu0 0.0
        %834 = vmatprep.subr.mxu0 0.0
        %835 = vmatpush1.xpose.msra.mxu0 0.0
        %836 = vmatprep.subr.mxu0 0.0
        %837 = vmatpush1.xpose.msra.mxu0 0.0
        %838 = vmatprep.subr.mxu0 0.0
        %839 = vmatpush1.xpose.msra.mxu0 0.0
        %840 = vmatprep.subr.mxu0 0.0
        %841 = vmatpush1.xpose.msra.mxu0 0.0
        %842 = vmatprep.subr.mxu0 0.0
        %843 = vmatpush1.xpose.msra.mxu0 0.0
        %844 = vmatprep.subr.mxu0 0.0
        %845 = vmatpush1.xpose.msra.mxu0 0.0
        %846 = vmatprep.subr.mxu0 0.0
        %847 = vmatpush1.xpose.msra.mxu0 0.0
        %848 = vmatprep.subr.mxu0 0.0
        %849 = vmatpush1.xpose.msra.mxu0 0.0
        %850 = vmatprep.subr.mxu0 0.0
        %851 = vmatpush1.xpose.msra.mxu0 0.0
        %852 = vmatprep.subr.mxu0 0.0
        %853 = vmatpush1.xpose.msra.mxu0 0.0
        %854 = vmatprep.subr.mxu0 0.0
        %855 = vmatpush1.xpose.msra.mxu0 0.0
        %856 = vmatprep.subr.mxu0 0.0
        %857 = vmatpush1.xpose.msra.mxu0 0.0
        %858 = vmatprep.subr.mxu0 0.0
        %859 = vmatpush1.xpose.msra.mxu0 0.0
        %860 = vmatprep.subr.mxu0 0.0
        %861 = vmatpush1.xpose.msra.mxu0 0.0
        %862 = vmatprep.mubr.f32.mxu0 0.0
        %863 = vmatmul.mubr.f32.gmra.mrb[0].mxu0 %v793
        %v864 = vpop.f32.mrb[0].mxu0
        %v865 = vadd.f32 0.0, %v864
        %v866 = vpop.f32.mrb[0].mxu0
        %867 = vdwg.mxu0
        %v868 = vsel %vm791, %v865, -inf
        %869 = vmax.xlane.f32.xlu0 %v868
        %v870 = vpop.xlane.xlu0 %869
        %v871 = vsub.f32 %v865, %v870
        %v872 = vmul.f32 %v871, 1.442695
        %v873 = vpow.pop %v872
        %v874 = vsel %vm791, %v873, 0.0
        %875 = vadd.xlane.f32.xlu0 %v874
        %v876 = vpop.xlane.xlu0 %875
        %v877 = vrcp.pop %v876
        %v878 = vmul.f32 %v873, %v877
        %v879 = vpack.c.bf16 %v878, %v878
        %vm880 = vcmask 60416
        %881 = vst.msk [vmem:[%s561] sm:$0xf] %vm880, %v879
        %v883 = vsel %vm791, %v878, 0
        %885 = vmatprep.subr.mxu0 0.0
        %886 = vmatpush1.msra.mxu0 %v785
        %887 = vmatprep.subr.mxu0 0.0
        %888 = vmatpush1.msra.mxu0 0.0
        %889 = vmatprep.subr.mxu0 0.0
        %890 = vmatpush1.msra.mxu0 0.0
        %891 = vmatprep.subr.mxu0 0.0
        %892 = vmatpush1.msra.mxu0 0.0
        %893 = vmatprep.subr.mxu0 0.0
        %894 = vmatpush1.msra.mxu0 0.0
        %895 = vmatprep.subr.mxu0 0.0
        %896 = vmatpush1.msra.mxu0 0.0
        %897 = vmatprep.subr.mxu0 0.0
        %898 = vmatpush1.msra.mxu0 0.0
        %899 = vmatprep.subr.mxu0 0.0
        %900 = vmatpush1.msra.mxu0 0.0
        %901 = vmatprep.subr.mxu0 0.0
        %902 = vmatpush1.msra.mxu0 0.0
        %903 = vmatprep.subr.mxu0 0.0
        %904 = vmatpush1.msra.mxu0 0.0
        %905 = vmatprep.subr.mxu0 0.0
        %906 = vmatpush1.msra.mxu0 0.0
        %907 = vmatprep.subr.mxu0 0.0
        %908 = vmatpush1.msra.mxu0 0.0
        %909 = vmatprep.subr.mxu0 0.0
        %910 = vmatpush1.msra.mxu0 0.0
        %911 = vmatprep.subr.mxu0 0.0
        %912 = vmatpush1.msra.mxu0 0.0
        %913 = vmatprep.subr.mxu0 0.0
        %914 = vmatpush1.msra.mxu0 0.0
        %915 = vmatprep.subr.mxu0 0.0
        %916 = vmatpush1.msra.mxu0 0.0
        %917 = vmatprep.subr.mxu0 0.0
        %918 = vmatpush1.msra.mxu0 0.0
        %919 = vmatprep.subr.mxu0 0.0
        %920 = vmatpush1.msra.mxu0 0.0
        %921 = vmatprep.subr.mxu0 0.0
        %922 = vmatpush1.msra.mxu0 0.0
        %923 = vmatprep.subr.mxu0 0.0
        %924 = vmatpush1.msra.mxu0 0.0
        %925 = vmatprep.subr.mxu0 0.0
        %926 = vmatpush1.msra.mxu0 0.0
        %927 = vmatprep.subr.mxu0 0.0
        %928 = vmatpush1.msra.mxu0 0.0
        %929 = vmatprep.subr.mxu0 0.0
        %930 = vmatpush1.msra.mxu0 0.0
        %931 = vmatprep.subr.mxu0 0.0
        %932 = vmatpush1.msra.mxu0 0.0
        %933 = vmatprep.subr.mxu0 0.0
        %934 = vmatpush1.msra.mxu0 0.0
        %935 = vmatprep.subr.mxu0 0.0
        %936 = vmatpush1.msra.mxu0 0.0
        %937 = vmatprep.subr.mxu0 0.0
        %938 = vmatpush1.msra.mxu0 0.0
        %939 = vmatprep.subr.mxu0 0.0
        %940 = vmatpush1.msra.mxu0 0.0
        %941 = vmatprep.subr.mxu0 0.0
        %942 = vmatpush1.msra.mxu0 0.0
        %943 = vmatprep.subr.mxu0 0.0
        %944 = vmatpush1.msra.mxu0 0.0
        %945 = vmatprep.subr.mxu0 0.0
        %946 = vmatpush1.msra.mxu0 0.0
        %947 = vmatprep.subr.mxu0 0.0
        %948 = vmatpush1.msra.mxu0 0.0
        %949 = vmatprep.mubr.f32.mxu0 0.0
        %950 = vmatmul.mubr.f32.gmra.mrb[0].mxu0 %v883
        %v951 = vpop.f32.mrb[0].mxu0
        %v952 = vadd.f32 0.0, %v951
        %v953 = vpop.f32.mrb[0].mxu0
        %954 = vdwg.mxu0
        %v955 = vpack.c.bf16 %v952, %v952
        %956 = vst.msk [vmem:[#allocation2] sm:$0xf] %vm880, %v955
        %957 = vrot.lane.b32.xlu0 %v637, 120
        %v958 = vpop.permute.xlu0 %957
        %959 = vrot.lane.b32.xlu0 %v711, 120
        %v960 = vpop.permute.xlu0 %959
        %v961 = vsel %vm791, %v958, 0
        %v963 = vsel %vm791, %v960, 0
        %965 = vmatprep.subr.mxu0 0.0
        %966 = vmatpush1.xpose.msra.mxu0 %v963
        %967 = vmatprep.subr.mxu0 0.0
        %968 = vmatpush1.xpose.msra.mxu0 0.0
        %969 = vmatprep.subr.mxu0 0.0
        %970 = vmatpush1.xpose.msra.mxu0 0.0
        %971 = vmatprep.subr.mxu0 0.0
        %972 = vmatpush1.xpose.msra.mxu0 0.0
        %973 = vmatprep.subr.mxu0 0.0
        %974 = vmatpush1.xpose.msra.mxu0 0.0
        %975 = vmatprep.subr.mxu0 0.0
        %976 = vmatpush1.xpose.msra.mxu0 0.0
        %977 = vmatprep.subr.mxu0 0.0
        %978 = vmatpush1.xpose.msra.mxu0 0.0
        %979 = vmatprep.subr.mxu0 0.0
        %980 = vmatpush1.xpose.msra.mxu0 0.0
        %981 = vmatprep.subr.mxu0 0.0
        %982 = vmatpush1.xpose.msra.mxu0 0.0
        %983 = vmatprep.subr.mxu0 0.0
        %984 = vmatpush1.xpose.msra.mxu0 0.0
        %985 = vmatprep.subr.mxu0 0.0
        %986 = vmatpush1.xpose.msra.mxu0 0.0
        %987 = vmatprep.subr.mxu0 0.0
        %988 = vmatpush1.xpose.msra.mxu0 0.0
        %989 = vmatprep.subr.mxu0 0.0
        %990 = vmatpush1.xpose.msra.mxu0 0.0
        %991 = vmatprep.subr.mxu0 0.0
        %992 = vmatpush1.xpose.msra.mxu0 0.0
        %993 = vmatprep.subr.mxu0 0.0
        %994 = vmatpush1.xpose.msra.mxu0 0.0
        %995 = vmatprep.subr.mxu0 0.0
        %996 = vmatpush1.xpose.msra.mxu0 0.0
        %997 = vmatprep.subr.mxu0 0.0
        %998 = vmatpush1.xpose.msra.mxu0 0.0
        %999 = vmatprep.subr.mxu0 0.0
        %1000 = vmatpush1.xpose.msra.mxu0 0.0
        %1001 = vmatprep.subr.mxu0 0.0
        %1002 = vmatpush1.xpose.msra.mxu0 0.0
        %1003 = vmatprep.subr.mxu0 0.0
        %1004 = vmatpush1.xpose.msra.mxu0 0.0
        %1005 = vmatprep.subr.mxu0 0.0
        %1006 = vmatpush1.xpose.msra.mxu0 0.0
        %1007 = vmatprep.subr.mxu0 0.0
        %1008 = vmatpush1.xpose.msra.mxu0 0.0
        %1009 = vmatprep.subr.mxu0 0.0
        %1010 = vmatpush1.xpose.msra.mxu0 0.0
        %1011 = vmatprep.subr.mxu0 0.0
        %1012 = vmatpush1.xpose.msra.mxu0 0.0
        %1013 = vmatprep.subr.mxu0 0.0
        %1014 = vmatpush1.xpose.msra.mxu0 0.0
        %1015 = vmatprep.subr.mxu0 0.0
        %1016 = vmatpush1.xpose.msra.mxu0 0.0
        %1017 = vmatprep.subr.mxu0 0.0
        %1018 = vmatpush1.xpose.msra.mxu0 0.0
        %1019 = vmatprep.subr.mxu0 0.0
        %1020 = vmatpush1.xpose.msra.mxu0 0.0
        %1021 = vmatprep.subr.mxu0 0.0
        %1022 = vmatpush1.xpose.msra.mxu0 0.0
        %1023 = vmatprep.subr.mxu0 0.0
        %1024 = vmatpush1.xpose.msra.mxu0 0.0
        %1025 = vmatprep.subr.mxu0 0.0
        %1026 = vmatpush1.xpose.msra.mxu0 0.0
        %1027 = vmatprep.subr.mxu0 0.0
        %1028 = vmatpush1.xpose.msra.mxu0 0.0
        %1029 = vmatprep.mubr.f32.mxu0 0.0
        %1030 = vmatmul.mubr.f32.gmra.mrb[0].mxu0 %v961
        %v1031 = vpop.f32.mrb[0].mxu0
        %v1032 = vadd.f32 0.0, %v1031
        %v1033 = vpop.f32.mrb[0].mxu0
        %1034 = vdwg.mxu0
        %v1035 = vsel %vm791, %v1032, -inf
        %1036 = vmax.xlane.f32.xlu0 %v1035
        %v1037 = vpop.xlane.xlu0 %1036
        %v1038 = vsub.f32 %v1032, %v1037
        %v1039 = vmul.f32 %v1038, 1.442695
        %v1040 = vpow.pop %v1039
        %v1041 = vsel %vm791, %v1040, 0.0
        %1042 = vadd.xlane.f32.xlu0 %v1041
        %v1043 = vpop.xlane.xlu0 %1042
        %v1044 = vrcp.pop %v1043
        %v1045 = vmul.f32 %v1040, %v1044
        %v1046 = vpack.c.bf16 %v1045, %v1045
        %s1047 = scalar_lea.vmem %s561, 4 [#allocation15]
        %1048 = vst.msk [vmem:[%s1047] sm:$0xf] %vm880, %v1046
        %1050 = vrot.lane.b32.xlu0 %v785, 120
        %v1051 = vpop.permute.xlu0 %1050
        %v1054 = vsel %vm791, %v1045, 0
        %1056 = vmatprep.subr.mxu0 0.0
        %1057 = vmatpush1.msra.mxu0 %v1051
        %1058 = vmatprep.subr.mxu0 0.0
        %1059 = vmatpush1.msra.mxu0 0.0
        %1060 = vmatprep.subr.mxu0 0.0
        %1061 = vmatpush1.msra.mxu0 0.0
        %1062 = vmatprep.subr.mxu0 0.0
        %1063 = vmatpush1.msra.mxu0 0.0
        %1064 = vmatprep.subr.mxu0 0.0
        %1065 = vmatpush1.msra.mxu0 0.0
        %1066 = vmatprep.subr.mxu0 0.0
        %1067 = vmatpush1.msra.mxu0 0.0
        %1068 = vmatprep.subr.mxu0 0.0
        %1069 = vmatpush1.msra.mxu0 0.0
        %1070 = vmatprep.subr.mxu0 0.0
        %1071 = vmatpush1.msra.mxu0 0.0
        %1072 = vmatprep.subr.mxu0 0.0
        %1073 = vmatpush1.msra.mxu0 0.0
        %1074 = vmatprep.subr.mxu0 0.0
        %1075 = vmatpush1.msra.mxu0 0.0
        %1076 = vmatprep.subr.mxu0 0.0
        %1077 = vmatpush1.msra.mxu0 0.0
        %1078 = vmatprep.subr.mxu0 0.0
        %1079 = vmatpush1.msra.mxu0 0.0
        %1080 = vmatprep.subr.mxu0 0.0
        %1081 = vmatpush1.msra.mxu0 0.0
        %1082 = vmatprep.subr.mxu0 0.0
        %1083 = vmatpush1.msra.mxu0 0.0
        %1084 = vmatprep.subr.mxu0 0.0
        %1085 = vmatpush1.msra.mxu0 0.0
        %1086 = vmatprep.subr.mxu0 0.0
        %1087 = vmatpush1.msra.mxu0 0.0
        %1088 = vmatprep.subr.mxu0 0.0
        %1089 = vmatpush1.msra.mxu0 0.0
        %1090 = vmatprep.subr.mxu0 0.0
        %1091 = vmatpush1.msra.mxu0 0.0
        %1092 = vmatprep.subr.mxu0 0.0
        %1093 = vmatpush1.msra.mxu0 0.0
        %1094 = vmatprep.subr.mxu0 0.0
        %1095 = vmatpush1.msra.mxu0 0.0
        %1096 = vmatprep.subr.mxu0 0.0
        %1097 = vmatpush1.msra.mxu0 0.0
        %1098 = vmatprep.subr.mxu0 0.0
        %1099 = vmatpush1.msra.mxu0 0.0
        %1100 = vmatprep.subr.mxu0 0.0
        %1101 = vmatpush1.msra.mxu0 0.0
        %1102 = vmatprep.subr.mxu0 0.0
        %1103 = vmatpush1.msra.mxu0 0.0
        %1104 = vmatprep.subr.mxu0 0.0
        %1105 = vmatpush1.msra.mxu0 0.0
        %1106 = vmatprep.subr.mxu0 0.0
        %1107 = vmatpush1.msra.mxu0 0.0
        %1108 = vmatprep.subr.mxu0 0.0
        %1109 = vmatpush1.msra.mxu0 0.0
        %1110 = vmatprep.subr.mxu0 0.0
        %1111 = vmatpush1.msra.mxu0 0.0
        %1112 = vmatprep.subr.mxu0 0.0
        %1113 = vmatpush1.msra.mxu0 0.0
        %1114 = vmatprep.subr.mxu0 0.0
        %1115 = vmatpush1.msra.mxu0 0.0
        %1116 = vmatprep.subr.mxu0 0.0
        %1117 = vmatpush1.msra.mxu0 0.0
        %1118 = vmatprep.subr.mxu0 0.0
        %1119 = vmatpush1.msra.mxu0 0.0
        %1120 = vmatprep.mubr.f32.mxu0 0.0
        %1121 = vmatmul.mubr.f32.gmra.mrb[0].mxu0 %v1054
        %v1122 = vpop.f32.mrb[0].mxu0
        %v1123 = vadd.f32 0.0, %v1122
        %v1124 = vpop.f32.mrb[0].mxu0
        %1125 = vdwg.mxu0
        %v1126 = vpack.c.bf16 %v1123, %v1123
        %1128 = vrot.lane.b32.xlu0 %v1126, 8
        %v1129 = vpop.permute.xlu0 %1128
        %vm1131 = vcmask 126016
        %1132 = vst.msk [vmem:[#allocation2] sm:$0xf] %vm1131, %v1129
        %1133 = vrot.lane.b32.xlu0 %v637, 112
        %v1134 = vpop.permute.xlu0 %1133
        %1135 = vrot.lane.b32.xlu0 %v711, 112
        %v1136 = vpop.permute.xlu0 %1135
        %v1137 = vsel %vm791, %v1134, 0
        %v1139 = vsel %vm791, %v1136, 0
        %1141 = vmatprep.subr.mxu0 0.0
        %1142 = vmatpush1.xpose.msra.mxu0 %v1139
        %1143 = vmatprep.subr.mxu0 0.0
        %1144 = vmatpush1.xpose.msra.mxu0 0.0
        %1145 = vmatprep.subr.mxu0 0.0
        %1146 = vmatpush1.xpose.msra.mxu0 0.0
        %1147 = vmatprep.subr.mxu0 0.0
        %1148 = vmatpush1.xpose.msra.mxu0 0.0
        %1149 = vmatprep.subr.mxu0 0.0
        %1150 = vmatpush1.xpose.msra.mxu0 0.0
        %1151 = vmatprep.subr.mxu0 0.0
        %1152 = vmatpush1.xpose.msra.mxu0 0.0
        %1153 = vmatprep.subr.mxu0 0.0
        %1154 = vmatpush1.xpose.msra.mxu0 0.0
        %1155 = vmatprep.subr.mxu0 0.0
        %1156 = vmatpush1.xpose.msra.mxu0 0.0
        %1157 = vmatprep.subr.mxu0 0.0
        %1158 = vmatpush1.xpose.msra.mxu0 0.0
        %1159 = vmatprep.subr.mxu0 0.0
        %1160 = vmatpush1.xpose.msra.mxu0 0.0
        %1161 = vmatprep.subr.mxu0 0.0
        %1162 = vmatpush1.xpose.msra.mxu0 0.0
        %1163 = vmatprep.subr.mxu0 0.0
        %1164 = vmatpush1.xpose.msra.mxu0 0.0
        %1165 = vmatprep.subr.mxu0 0.0
        %1166 = vmatpush1.xpose.msra.mxu0 0.0
        %1167 = vmatprep.subr.mxu0 0.0
        %1168 = vmatpush1.xpose.msra.mxu0 0.0
        %1169 = vmatprep.subr.mxu0 0.0
        %1170 = vmatpush1.xpose.msra.mxu0 0.0
        %1171 = vmatprep.subr.mxu0 0.0
        %1172 = vmatpush1.xpose.msra.mxu0 0.0
        %1173 = vmatprep.subr.mxu0 0.0
        %1174 = vmatpush1.xpose.msra.mxu0 0.0
        %1175 = vmatprep.subr.mxu0 0.0
        %1176 = vmatpush1.xpose.msra.mxu0 0.0
        %1177 = vmatprep.subr.mxu0 0.0
        %1178 = vmatpush1.xpose.msra.mxu0 0.0
        %1179 = vmatprep.subr.mxu0 0.0
        %1180 = vmatpush1.xpose.msra.mxu0 0.0
        %1181 = vmatprep.subr.mxu0 0.0
        %1182 = vmatpush1.xpose.msra.mxu0 0.0
        %1183 = vmatprep.subr.mxu0 0.0
        %1184 = vmatpush1.xpose.msra.mxu0 0.0
        %1185 = vmatprep.subr.mxu0 0.0
        %1186 = vmatpush1.xpose.msra.mxu0 0.0
        %1187 = vmatprep.subr.mxu0 0.0
        %1188 = vmatpush1.xpose.msra.mxu0 0.0
        %1189 = vmatprep.subr.mxu0 0.0
        %1190 = vmatpush1.xpose.msra.mxu0 0.0
        %1191 = vmatprep.subr.mxu0 0.0
        %1192 = vmatpush1.xpose.msra.mxu0 0.0
        %1193 = vmatprep.subr.mxu0 0.0
        %1194 = vmatpush1.xpose.msra.mxu0 0.0
        %1195 = vmatprep.subr.mxu0 0.0
        %1196 = vmatpush1.xpose.msra.mxu0 0.0
        %1197 = vmatprep.subr.mxu0 0.0
        %1198 = vmatpush1.xpose.msra.mxu0 0.0
        %1199 = vmatprep.subr.mxu0 0.0
        %1200 = vmatpush1.xpose.msra.mxu0 0.0
        %1201 = vmatprep.subr.mxu0 0.0
        %1202 = vmatpush1.xpose.msra.mxu0 0.0
        %1203 = vmatprep.subr.mxu0 0.0
        %1204 = vmatpush1.xpose.msra.mxu0 0.0
        %1205 = vmatprep.mubr.f32.mxu0 0.0
        %1206 = vmatmul.mubr.f32.gmra.mrb[0].mxu0 %v1137
        %v1207 = vpop.f32.mrb[0].mxu0
        %v1208 = vadd.f32 0.0, %v1207
        %v1209 = vpop.f32.mrb[0].mxu0
        %1210 = vdwg.mxu0
        %v1211 = vsel %vm791, %v1208, -inf
        %1212 = vmax.xlane.f32.xlu0 %v1211
        %v1213 = vpop.xlane.xlu0 %1212
        %v1214 = vsub.f32 %v1208, %v1213
        %v1215 = vmul.f32 %v1214, 1.442695
        %v1216 = vpow.pop %v1215
        %v1217 = vsel %vm791, %v1216, 0.0
        %1218 = vadd.xlane.f32.xlu0 %v1217
        %v1219 = vpop.xlane.xlu0 %1218
        %v1220 = vrcp.pop %v1219
        %v1221 = vmul.f32 %v1216, %v1220
        %v1222 = vpack.c.bf16 %v1221, %v1221
        %s1223 = scalar_lea.vmem %s561, 8 [#allocation15]
        %1224 = vst.msk [vmem:[%s1223] sm:$0xf] %vm880, %v1222
        %1225 = vrot.lane.b32.xlu0 %v785, 112
        %v1226 = vpop.permute.xlu0 %1225
        %v1229 = vsel %vm791, %v1221, 0
        %1231 = vmatprep.subr.mxu0 0.0
        %1232 = vmatpush1.msra.mxu0 %v1226
        %1233 = vmatprep.subr.mxu0 0.0
        %1234 = vmatpush1.msra.mxu0 0.0
        %1235 = vmatprep.subr.mxu0 0.0
        %1236 = vmatpush1.msra.mxu0 0.0
        %1237 = vmatprep.subr.mxu0 0.0
        %1238 = vmatpush1.msra.mxu0 0.0
        %1239 = vmatprep.subr.mxu0 0.0
        %1240 = vmatpush1.msra.mxu0 0.0
        %1241 = vmatprep.subr.mxu0 0.0
        %1242 = vmatpush1.msra.mxu0 0.0
        %1243 = vmatprep.subr.mxu0 0.0
        %1244 = vmatpush1.msra.mxu0 0.0
        %1245 = vmatprep.subr.mxu0 0.0
        %1246 = vmatpush1.msra.mxu0 0.0
        %1247 = vmatprep.subr.mxu0 0.0
        %1248 = vmatpush1.msra.mxu0 0.0
        %1249 = vmatprep.subr.mxu0 0.0
        %1250 = vmatpush1.msra.mxu0 0.0
        %1251 = vmatprep.subr.mxu0 0.0
        %1252 = vmatpush1.msra.mxu0 0.0
        %1253 = vmatprep.subr.mxu0 0.0
        %1254 = vmatpush1.msra.mxu0 0.0
        %1255 = vmatprep.subr.mxu0 0.0
        %1256 = vmatpush1.msra.mxu0 0.0
        %1257 = vmatprep.subr.mxu0 0.0
        %1258 = vmatpush1.msra.mxu0 0.0
        %1259 = vmatprep.subr.mxu0 0.0
        %1260 = vmatpush1.msra.mxu0 0.0
        %1261 = vmatprep.subr.mxu0 0.0
        %1262 = vmatpush1.msra.mxu0 0.0
        %1263 = vmatprep.subr.mxu0 0.0
        %1264 = vmatpush1.msra.mxu0 0.0
        %1265 = vmatprep.subr.mxu0 0.0
        %1266 = vmatpush1.msra.mxu0 0.0
        %1267 = vmatprep.subr.mxu0 0.0
        %1268 = vmatpush1.msra.mxu0 0.0
        %1269 = vmatprep.subr.mxu0 0.0
        %1270 = vmatpush1.msra.mxu0 0.0
        %1271 = vmatprep.subr.mxu0 0.0
        %1272 = vmatpush1.msra.mxu0 0.0
        %1273 = vmatprep.subr.mxu0 0.0
        %1274 = vmatpush1.msra.mxu0 0.0
        %1275 = vmatprep.subr.mxu0 0.0
        %1276 = vmatpush1.msra.mxu0 0.0
        %1277 = vmatprep.subr.mxu0 0.0
        %1278 = vmatpush1.msra.mxu0 0.0
        %1279 = vmatprep.subr.mxu0 0.0
        %1280 = vmatpush1.msra.mxu0 0.0
        %1281 = vmatprep.subr.mxu0 0.0
        %1282 = vmatpush1.msra.mxu0 0.0
        %1283 = vmatprep.subr.mxu0 0.0
        %1284 = vmatpush1.msra.mxu0 0.0
        %1285 = vmatprep.subr.mxu0 0.0
        %1286 = vmatpush1.msra.mxu0 0.0
        %1287 = vmatprep.subr.mxu0 0.0
        %1288 = vmatpush1.msra.mxu0 0.0
        %1289 = vmatprep.subr.mxu0 0.0
        %1290 = vmatpush1.msra.mxu0 0.0
        %1291 = vmatprep.subr.mxu0 0.0
        %1292 = vmatpush1.msra.mxu0 0.0
        %1293 = vmatprep.subr.mxu0 0.0
        %1294 = vmatpush1.msra.mxu0 0.0
        %1295 = vmatprep.mubr.f32.mxu0 0.0
        %1296 = vmatmul.mubr.f32.gmra.mrb[0].mxu0 %v1229
        %v1297 = vpop.f32.mrb[0].mxu0
        %v1298 = vadd.f32 0.0, %v1297
        %v1299 = vpop.f32.mrb[0].mxu0
        %1300 = vdwg.mxu0
        %v1301 = vpack.c.bf16 %v1298, %v1298
        %1303 = vrot.lane.b32.xlu0 %v1301, 16
        %v1304 = vpop.permute.xlu0 %1303
        %vm1306 = vcmask 191616
        %1307 = vst.msk [vmem:[#allocation2] sm:$0xf] %vm1306, %v1304
        %1308 = vrot.lane.b32.xlu0 %v637, 104
        %v1309 = vpop.permute.xlu0 %1308
        %1310 = vrot.lane.b32.xlu0 %v711, 104
        %v1311 = vpop.permute.xlu0 %1310
        %v1312 = vsel %vm791, %v1309, 0
        %v1314 = vsel %vm791, %v1311, 0
        %1316 = vmatprep.subr.mxu0 0.0
        %1317 = vmatpush1.xpose.msra.mxu0 %v1314
        %1318 = vmatprep.subr.mxu0 0.0
        %1319 = vmatpush1.xpose.msra.mxu0 0.0
        %1320 = vmatprep.subr.mxu0 0.0
        %1321 = vmatpush1.xpose.msra.mxu0 0.0
        %1322 = vmatprep.subr.mxu0 0.0
        %1323 = vmatpush1.xpose.msra.mxu0 0.0
        %1324 = vmatprep.subr.mxu0 0.0
        %1325 = vmatpush1.xpose.msra.mxu0 0.0
        %1326 = vmatprep.subr.mxu0 0.0
        %1327 = vmatpush1.xpose.msra.mxu0 0.0
        %1328 = vmatprep.subr.mxu0 0.0
        %1329 = vmatpush1.xpose.msra.mxu0 0.0
        %1330 = vmatprep.subr.mxu0 0.0
        %1331 = vmatpush1.xpose.msra.mxu0 0.0
        %1332 = vmatprep.subr.mxu0 0.0
        %1333 = vmatpush1.xpose.msra.mxu0 0.0
        %1334 = vmatprep.subr.mxu0 0.0
        %1335 = vmatpush1.xpose.msra.mxu0 0.0
        %1336 = vmatprep.subr.mxu0 0.0
        %1337 = vmatpush1.xpose.msra.mxu0 0.0
        %1338 = vmatprep.subr.mxu0 0.0
        %1339 = vmatpush1.xpose.msra.mxu0 0.0
        %1340 = vmatprep.subr.mxu0 0.0
        %1341 = vmatpush1.xpose.msra.mxu0 0.0
        %1342 = vmatprep.subr.mxu0 0.0
        %1343 = vmatpush1.xpose.msra.mxu0 0.0
        %1344 = vmatprep.subr.mxu0 0.0
        %1345 = vmatpush1.xpose.msra.mxu0 0.0
        %1346 = vmatprep.subr.mxu0 0.0
        %1347 = vmatpush1.xpose.msra.mxu0 0.0
        %1348 = vmatprep.subr.mxu0 0.0
        %1349 = vmatpush1.xpose.msra.mxu0 0.0
        %1350 = vmatprep.subr.mxu0 0.0
        %1351 = vmatpush1.xpose.msra.mxu0 0.0
        %1352 = vmatprep.subr.mxu0 0.0
        %1353 = vmatpush1.xpose.msra.mxu0 0.0
        %1354 = vmatprep.subr.mxu0 0.0
        %1355 = vmatpush1.xpose.msra.mxu0 0.0
        %1356 = vmatprep.subr.mxu0 0.0
        %1357 = vmatpush1.xpose.msra.mxu0 0.0
        %1358 = vmatprep.subr.mxu0 0.0
        %1359 = vmatpush1.xpose.msra.mxu0 0.0
        %1360 = vmatprep.subr.mxu0 0.0
        %1361 = vmatpush1.xpose.msra.mxu0 0.0
        %1362 = vmatprep.subr.mxu0 0.0
        %1363 = vmatpush1.xpose.msra.mxu0 0.0
        %1364 = vmatprep.subr.mxu0 0.0
        %1365 = vmatpush1.xpose.msra.mxu0 0.0
        %1366 = vmatprep.subr.mxu0 0.0
        %1367 = vmatpush1.xpose.msra.mxu0 0.0
        %1368 = vmatprep.subr.mxu0 0.0
        %1369 = vmatpush1.xpose.msra.mxu0 0.0
        %1370 = vmatprep.subr.mxu0 0.0
        %1371 = vmatpush1.xpose.msra.mxu0 0.0
        %1372 = vmatprep.subr.mxu0 0.0
        %1373 = vmatpush1.xpose.msra.mxu0 0.0
        %1374 = vmatprep.subr.mxu0 0.0
        %1375 = vmatpush1.xpose.msra.mxu0 0.0
        %1376 = vmatprep.subr.mxu0 0.0
        %1377 = vmatpush1.xpose.msra.mxu0 0.0
        %1378 = vmatprep.subr.mxu0 0.0
        %1379 = vmatpush1.xpose.msra.mxu0 0.0
        %1380 = vmatprep.mubr.f32.mxu0 0.0
        %1381 = vmatmul.mubr.f32.gmra.mrb[0].mxu0 %v1312
        %v1382 = vpop.f32.mrb[0].mxu0
        %v1383 = vadd.f32 0.0, %v1382
        %v1384 = vpop.f32.mrb[0].mxu0
        %1385 = vdwg.mxu0
        %v1386 = vsel %vm791, %v1383, -inf
        %1387 = vmax.xlane.f32.xlu0 %v1386
        %v1388 = vpop.xlane.xlu0 %1387
        %v1389 = vsub.f32 %v1383, %v1388
        %v1390 = vmul.f32 %v1389, 1.442695
        %v1391 = vpow.pop %v1390
        %v1392 = vsel %vm791, %v1391, 0.0
        %1393 = vadd.xlane.f32.xlu0 %v1392
        %v1394 = vpop.xlane.xlu0 %1393
        %v1395 = vrcp.pop %v1394
        %v1396 = vmul.f32 %v1391, %v1395
        %v1397 = vpack.c.bf16 %v1396, %v1396
        %s1398 = scalar_lea.vmem %s561, 12 [#allocation15]
        %1399 = vst.msk [vmem:[%s1398] sm:$0xf] %vm880, %v1397
        %1400 = vrot.lane.b32.xlu0 %v785, 104
        %v1401 = vpop.permute.xlu0 %1400
        %v1404 = vsel %vm791, %v1396, 0
        %1406 = vmatprep.subr.mxu0 0.0
        %1407 = vmatpush1.msra.mxu0 %v1401
        %1408 = vmatprep.subr.mxu0 0.0
        %1409 = vmatpush1.msra.mxu0 0.0
        %1410 = vmatprep.subr.mxu0 0.0
        %1411 = vmatpush1.msra.mxu0 0.0
        %1412 = vmatprep.subr.mxu0 0.0
        %1413 = vmatpush1.msra.mxu0 0.0
        %1414 = vmatprep.subr.mxu0 0.0
        %1415 = vmatpush1.msra.mxu0 0.0
        %1416 = vmatprep.subr.mxu0 0.0
        %1417 = vmatpush1.msra.mxu0 0.0
        %1418 = vmatprep.subr.mxu0 0.0
        %1419 = vmatpush1.msra.mxu0 0.0
        %1420 = vmatprep.subr.mxu0 0.0
        %1421 = vmatpush1.msra.mxu0 0.0
        %1422 = vmatprep.subr.mxu0 0.0
        %1423 = vmatpush1.msra.mxu0 0.0
        %1424 = vmatprep.subr.mxu0 0.0
        %1425 = vmatpush1.msra.mxu0 0.0
        %1426 = vmatprep.subr.mxu0 0.0
        %1427 = vmatpush1.msra.mxu0 0.0
        %1428 = vmatprep.subr.mxu0 0.0
        %1429 = vmatpush1.msra.mxu0 0.0
        %1430 = vmatprep.subr.mxu0 0.0
        %1431 = vmatpush1.msra.mxu0 0.0
        %1432 = vmatprep.subr.mxu0 0.0
        %1433 = vmatpush1.msra.mxu0 0.0
        %1434 = vmatprep.subr.mxu0 0.0
        %1435 = vmatpush1.msra.mxu0 0.0
        %1436 = vmatprep.subr.mxu0 0.0
        %1437 = vmatpush1.msra.mxu0 0.0
        %1438 = vmatprep.subr.mxu0 0.0
        %1439 = vmatpush1.msra.mxu0 0.0
        %1440 = vmatprep.subr.mxu0 0.0
        %1441 = vmatpush1.msra.mxu0 0.0
        %1442 = vmatprep.subr.mxu0 0.0
        %1443 = vmatpush1.msra.mxu0 0.0
        %1444 = vmatprep.subr.mxu0 0.0
        %1445 = vmatpush1.msra.mxu0 0.0
        %1446 = vmatprep.subr.mxu0 0.0
        %1447 = vmatpush1.msra.mxu0 0.0
        %1448 = vmatprep.subr.mxu0 0.0
        %1449 = vmatpush1.msra.mxu0 0.0
        %1450 = vmatprep.subr.mxu0 0.0
        %1451 = vmatpush1.msra.mxu0 0.0
        %1452 = vmatprep.subr.mxu0 0.0
        %1453 = vmatpush1.msra.mxu0 0.0
        %1454 = vmatprep.subr.mxu0 0.0
        %1455 = vmatpush1.msra.mxu0 0.0
        %1456 = vmatprep.subr.mxu0 0.0
        %1457 = vmatpush1.msra.mxu0 0.0
        %1458 = vmatprep.subr.mxu0 0.0
        %1459 = vmatpush1.msra.mxu0 0.0
        %1460 = vmatprep.subr.mxu0 0.0
        %1461 = vmatpush1.msra.mxu0 0.0
        %1462 = vmatprep.subr.mxu0 0.0
        %1463 = vmatpush1.msra.mxu0 0.0
        %1464 = vmatprep.subr.mxu0 0.0
        %1465 = vmatpush1.msra.mxu0 0.0
        %1466 = vmatprep.subr.mxu0 0.0
        %1467 = vmatpush1.msra.mxu0 0.0
        %1468 = vmatprep.subr.mxu0 0.0
        %1469 = vmatpush1.msra.mxu0 0.0
        %1470 = vmatprep.mubr.f32.mxu0 0.0
        %1471 = vmatmul.mubr.f32.gmra.mrb[0].mxu0 %v1404
        %v1472 = vpop.f32.mrb[0].mxu0
        %v1473 = vadd.f32 0.0, %v1472
        %v1474 = vpop.f32.mrb[0].mxu0
        %1475 = vdwg.mxu0
        %v1476 = vpack.c.bf16 %v1473, %v1473
        %1478 = vrot.lane.b32.xlu0 %v1476, 24
        %v1479 = vpop.permute.xlu0 %1478
        %vm1481 = vcmask 257216
        %1482 = vst.msk [vmem:[#allocation2] sm:$0xf] %vm1481, %v1479
        %v1484 = vsel %vm791, %v640, 0
        %v1487 = vsel %vm791, %v714, 0
        %1489 = vmatprep.subr.mxu0 0.0
        %1490 = vmatpush1.xpose.msra.mxu0 %v1487
        %1491 = vmatprep.subr.mxu0 0.0
        %1492 = vmatpush1.xpose.msra.mxu0 0.0
        %1493 = vmatprep.subr.mxu0 0.0
        %1494 = vmatpush1.xpose.msra.mxu0 0.0
        %1495 = vmatprep.subr.mxu0 0.0
        %1496 = vmatpush1.xpose.msra.mxu0 0.0
        %1497 = vmatprep.subr.mxu0 0.0
        %1498 = vmatpush1.xpose.msra.mxu0 0.0
        %1499 = vmatprep.subr.mxu0 0.0
        %1500 = vmatpush1.xpose.msra.mxu0 0.0
        %1501 = vmatprep.subr.mxu0 0.0
        %1502 = vmatpush1.xpose.msra.mxu0 0.0
        %1503 = vmatprep.subr.mxu0 0.0
        %1504 = vmatpush1.xpose.msra.mxu0 0.0
        %1505 = vmatprep.subr.mxu0 0.0
        %1506 = vmatpush1.xpose.msra.mxu0 0.0
        %1507 = vmatprep.subr.mxu0 0.0
        %1508 = vmatpush1.xpose.msra.mxu0 0.0
        %1509 = vmatprep.subr.mxu0 0.0
        %1510 = vmatpush1.xpose.msra.mxu0 0.0
        %1511 = vmatprep.subr.mxu0 0.0
        %1512 = vmatpush1.xpose.msra.mxu0 0.0
        %1513 = vmatprep.subr.mxu0 0.0
        %1514 = vmatpush1.xpose.msra.mxu0 0.0
        %1515 = vmatprep.subr.mxu0 0.0
        %1516 = vmatpush1.xpose.msra.mxu0 0.0
        %1517 = vmatprep.subr.mxu0 0.0
        %1518 = vmatpush1.xpose.msra.mxu0 0.0
        %1519 = vmatprep.subr.mxu0 0.0
        %1520 = vmatpush1.xpose.msra.mxu0 0.0
        %1521 = vmatprep.subr.mxu0 0.0
        %1522 = vmatpush1.xpose.msra.mxu0 0.0
        %1523 = vmatprep.subr.mxu0 0.0
        %1524 = vmatpush1.xpose.msra.mxu0 0.0
        %1525 = vmatprep.subr.mxu0 0.0
        %1526 = vmatpush1.xpose.msra.mxu0 0.0
        %1527 = vmatprep.subr.mxu0 0.0
        %1528 = vmatpush1.xpose.msra.mxu0 0.0
        %1529 = vmatprep.subr.mxu0 0.0
        %1530 = vmatpush1.xpose.msra.mxu0 0.0
        %1531 = vmatprep.subr.mxu0 0.0
        %1532 = vmatpush1.xpose.msra.mxu0 0.0
        %1533 = vmatprep.subr.mxu0 0.0
        %1534 = vmatpush1.xpose.msra.mxu0 0.0
        %1535 = vmatprep.subr.mxu0 0.0
        %1536 = vmatpush1.xpose.msra.mxu0 0.0
        %1537 = vmatprep.subr.mxu0 0.0
        %1538 = vmatpush1.xpose.msra.mxu0 0.0
        %1539 = vmatprep.subr.mxu0 0.0
        %1540 = vmatpush1.xpose.msra.mxu0 0.0
        %1541 = vmatprep.subr.mxu0 0.0
        %1542 = vmatpush1.xpose.msra.mxu0 0.0
        %1543 = vmatprep.subr.mxu0 0.0
        %1544 = vmatpush1.xpose.msra.mxu0 0.0
        %1545 = vmatprep.subr.mxu0 0.0
        %1546 = vmatpush1.xpose.msra.mxu0 0.0
        %1547 = vmatprep.subr.mxu0 0.0
        %1548 = vmatpush1.xpose.msra.mxu0 0.0
        %1549 = vmatprep.subr.mxu0 0.0
        %1550 = vmatpush1.xpose.msra.mxu0 0.0
        %1551 = vmatprep.subr.mxu0 0.0
        %1552 = vmatpush1.xpose.msra.mxu0 0.0
        %1553 = vmatprep.mubr.f32.mxu0 0.0
        %1554 = vmatmul.mubr.f32.gmra.mrb[0].mxu0 %v1484
        %v1555 = vpop.f32.mrb[0].mxu0
        %v1556 = vadd.f32 0.0, %v1555
        %v1557 = vpop.f32.mrb[0].mxu0
        %1558 = vdwg.mxu0
        %v1559 = vsel %vm791, %v1556, -inf
        %1560 = vmax.xlane.f32.xlu0 %v1559
        %v1561 = vpop.xlane.xlu0 %1560
        %v1562 = vsub.f32 %v1556, %v1561
        %v1563 = vmul.f32 %v1562, 1.442695
        %v1564 = vpow.pop %v1563
        %v1565 = vsel %vm791, %v1564, 0.0
        %1566 = vadd.xlane.f32.xlu0 %v1565
        %v1567 = vpop.xlane.xlu0 %1566
        %v1568 = vrcp.pop %v1567
        %v1569 = vmul.f32 %v1564, %v1568
        %v1570 = vpack.c.bf16 %v1569, %v1569
        %s1571 = scalar_lea.vmem %s561, 16 [#allocation15]
        %1572 = vst.msk [vmem:[%s1571] sm:$0xf] %vm880, %v1570
        %v1574 = vsel %vm791, %v1569, 0
        %1576 = vmatprep.subr.mxu0 0.0
        %1577 = vmatpush1.msra.mxu0 %v788
        %1578 = vmatprep.subr.mxu0 0.0
        %1579 = vmatpush1.msra.mxu0 0.0
        %1580 = vmatprep.subr.mxu0 0.0
        %1581 = vmatpush1.msra.mxu0 0.0
        %1582 = vmatprep.subr.mxu0 0.0
        %1583 = vmatpush1.msra.mxu0 0.0
        %1584 = vmatprep.subr.mxu0 0.0
        %1585 = vmatpush1.msra.mxu0 0.0
        %1586 = vmatprep.subr.mxu0 0.0
        %1587 = vmatpush1.msra.mxu0 0.0
        %1588 = vmatprep.subr.mxu0 0.0
        %1589 = vmatpush1.msra.mxu0 0.0
        %1590 = vmatprep.subr.mxu0 0.0
        %1591 = vmatpush1.msra.mxu0 0.0
        %1592 = vmatprep.subr.mxu0 0.0
        %1593 = vmatpush1.msra.mxu0 0.0
        %1594 = vmatprep.subr.mxu0 0.0
        %1595 = vmatpush1.msra.mxu0 0.0
        %1596 = vmatprep.subr.mxu0 0.0
        %1597 = vmatpush1.msra.mxu0 0.0
        %1598 = vmatprep.subr.mxu0 0.0
        %1599 = vmatpush1.msra.mxu0 0.0
        %1600 = vmatprep.subr.mxu0 0.0
        %1601 = vmatpush1.msra.mxu0 0.0
        %1602 = vmatprep.subr.mxu0 0.0
        %1603 = vmatpush1.msra.mxu0 0.0
        %1604 = vmatprep.subr.mxu0 0.0
        %1605 = vmatpush1.msra.mxu0 0.0
        %1606 = vmatprep.subr.mxu0 0.0
        %1607 = vmatpush1.msra.mxu0 0.0
        %1608 = vmatprep.subr.mxu0 0.0
        %1609 = vmatpush1.msra.mxu0 0.0
        %1610 = vmatprep.subr.mxu0 0.0
        %1611 = vmatpush1.msra.mxu0 0.0
        %1612 = vmatprep.subr.mxu0 0.0
        %1613 = vmatpush1.msra.mxu0 0.0
        %1614 = vmatprep.subr.mxu0 0.0
        %1615 = vmatpush1.msra.mxu0 0.0
        %1616 = vmatprep.subr.mxu0 0.0
        %1617 = vmatpush1.msra.mxu0 0.0
        %1618 = vmatprep.subr.mxu0 0.0
        %1619 = vmatpush1.msra.mxu0 0.0
        %1620 = vmatprep.subr.mxu0 0.0
        %1621 = vmatpush1.msra.mxu0 0.0
        %1622 = vmatprep.subr.mxu0 0.0
        %1623 = vmatpush1.msra.mxu0 0.0
        %1624 = vmatprep.subr.mxu0 0.0
        %1625 = vmatpush1.msra.mxu0 0.0
        %1626 = vmatprep.subr.mxu0 0.0
        %1627 = vmatpush1.msra.mxu0 0.0
        %1628 = vmatprep.subr.mxu0 0.0
        %1629 = vmatpush1.msra.mxu0 0.0
        %1630 = vmatprep.subr.mxu0 0.0
        %1631 = vmatpush1.msra.mxu0 0.0
        %1632 = vmatprep.subr.mxu0 0.0
        %1633 = vmatpush1.msra.mxu0 0.0
        %1634 = vmatprep.subr.mxu0 0.0
        %1635 = vmatpush1.msra.mxu0 0.0
        %1636 = vmatprep.subr.mxu0 0.0
        %1637 = vmatpush1.msra.mxu0 0.0
        %1638 = vmatprep.subr.mxu0 0.0
        %1639 = vmatpush1.msra.mxu0 0.0
        %1640 = vmatprep.mubr.f32.mxu0 0.0
        %1641 = vmatmul.mubr.f32.gmra.mrb[0].mxu0 %v1574
        %v1642 = vpop.f32.mrb[0].mxu0
        %v1643 = vadd.f32 0.0, %v1642
        %v1644 = vpop.f32.mrb[0].mxu0
        %1645 = vdwg.mxu0
        %v1646 = vpack.c.bf16 %v1643, %v1643
        %v1648 = vrot.slane %v1646, 4
        %vm1650 = vcmask 64516
        %1651 = vst.msk [vmem:[#allocation2] sm:$0xf0] %vm1650, %v1648
        %1652 = vrot.lane.b32.xlu0 %v640, 120
        %v1653 = vpop.permute.xlu0 %1652
        %1654 = vrot.lane.b32.xlu0 %v714, 120
        %v1655 = vpop.permute.xlu0 %1654
        %v1656 = vsel %vm791, %v1653, 0
        %v1658 = vsel %vm791, %v1655, 0
        %1660 = vmatprep.subr.mxu0 0.0
        %1661 = vmatpush1.xpose.msra.mxu0 %v1658
        %1662 = vmatprep.subr.mxu0 0.0
        %1663 = vmatpush1.xpose.msra.mxu0 0.0
        %1664 = vmatprep.subr.mxu0 0.0
        %1665 = vmatpush1.xpose.msra.mxu0 0.0
        %1666 = vmatprep.subr.mxu0 0.0
        %1667 = vmatpush1.xpose.msra.mxu0 0.0
        %1668 = vmatprep.subr.mxu0 0.0
        %1669 = vmatpush1.xpose.msra.mxu0 0.0
        %1670 = vmatprep.subr.mxu0 0.0
        %1671 = vmatpush1.xpose.msra.mxu0 0.0
        %1672 = vmatprep.subr.mxu0 0.0
        %1673 = vmatpush1.xpose.msra.mxu0 0.0
        %1674 = vmatprep.subr.mxu0 0.0
        %1675 = vmatpush1.xpose.msra.mxu0 0.0
        %1676 = vmatprep.subr.mxu0 0.0
        %1677 = vmatpush1.xpose.msra.mxu0 0.0
        %1678 = vmatprep.subr.mxu0 0.0
        %1679 = vmatpush1.xpose.msra.mxu0 0.0
        %1680 = vmatprep.subr.mxu0 0.0
        %1681 = vmatpush1.xpose.msra.mxu0 0.0
        %1682 = vmatprep.subr.mxu0 0.0
        %1683 = vmatpush1.xpose.msra.mxu0 0.0
        %1684 = vmatprep.subr.mxu0 0.0
        %1685 = vmatpush1.xpose.msra.mxu0 0.0
        %1686 = vmatprep.subr.mxu0 0.0
        %1687 = vmatpush1.xpose.msra.mxu0 0.0
        %1688 = vmatprep.subr.mxu0 0.0
        %1689 = vmatpush1.xpose.msra.mxu0 0.0
        %1690 = vmatprep.subr.mxu0 0.0
        %1691 = vmatpush1.xpose.msra.mxu0 0.0
        %1692 = vmatprep.subr.mxu0 0.0
        %1693 = vmatpush1.xpose.msra.mxu0 0.0
        %1694 = vmatprep.subr.mxu0 0.0
        %1695 = vmatpush1.xpose.msra.mxu0 0.0
        %1696 = vmatprep.subr.mxu0 0.0
        %1697 = vmatpush1.xpose.msra.mxu0 0.0
        %1698 = vmatprep.subr.mxu0 0.0
        %1699 = vmatpush1.xpose.msra.mxu0 0.0
        %1700 = vmatprep.subr.mxu0 0.0
        %1701 = vmatpush1.xpose.msra.mxu0 0.0
        %1702 = vmatprep.subr.mxu0 0.0
        %1703 = vmatpush1.xpose.msra.mxu0 0.0
        %1704 = vmatprep.subr.mxu0 0.0
        %1705 = vmatpush1.xpose.msra.mxu0 0.0
        %1706 = vmatprep.subr.mxu0 0.0
        %1707 = vmatpush1.xpose.msra.mxu0 0.0
        %1708 = vmatprep.subr.mxu0 0.0
        %1709 = vmatpush1.xpose.msra.mxu0 0.0
        %1710 = vmatprep.subr.mxu0 0.0
        %1711 = vmatpush1.xpose.msra.mxu0 0.0
        %1712 = vmatprep.subr.mxu0 0.0
        %1713 = vmatpush1.xpose.msra.mxu0 0.0
        %1714 = vmatprep.subr.mxu0 0.0
        %1715 = vmatpush1.xpose.msra.mxu0 0.0
        %1716 = vmatprep.subr.mxu0 0.0
        %1717 = vmatpush1.xpose.msra.mxu0 0.0
        %1718 = vmatprep.subr.mxu0 0.0
        %1719 = vmatpush1.xpose.msra.mxu0 0.0
        %1720 = vmatprep.subr.mxu0 0.0
        %1721 = vmatpush1.xpose.msra.mxu0 0.0
        %1722 = vmatprep.subr.mxu0 0.0
        %1723 = vmatpush1.xpose.msra.mxu0 0.0
        %1724 = vmatprep.mubr.f32.mxu0 0.0
        %1725 = vmatmul.mubr.f32.gmra.mrb[0].mxu0 %v1656
        %v1726 = vpop.f32.mrb[0].mxu0
        %v1727 = vadd.f32 0.0, %v1726
        %v1728 = vpop.f32.mrb[0].mxu0
        %1729 = vdwg.mxu0
        %v1730 = vsel %vm791, %v1727, -inf
        %1731 = vmax.xlane.f32.xlu0 %v1730
        %v1732 = vpop.xlane.xlu0 %1731
        %v1733 = vsub.f32 %v1727, %v1732
        %v1734 = vmul.f32 %v1733, 1.442695
        %v1735 = vpow.pop %v1734
        %v1736 = vsel %vm791, %v1735, 0.0
        %1737 = vadd.xlane.f32.xlu0 %v1736
        %v1738 = vpop.xlane.xlu0 %1737
        %v1739 = vrcp.pop %v1738
        %v1740 = vmul.f32 %v1735, %v1739
        %v1741 = vpack.c.bf16 %v1740, %v1740
        %s1742 = scalar_lea.vmem %s561, 20 [#allocation15]
        %1743 = vst.msk [vmem:[%s1742] sm:$0xf] %vm880, %v1741
        %1745 = vrot.lane.b32.xlu0 %v788, 120
        %v1746 = vpop.permute.xlu0 %1745
        %v1749 = vsel %vm791, %v1740, 0
        %1751 = vmatprep.subr.mxu0 0.0
        %1752 = vmatpush1.msra.mxu0 %v1746
        %1753 = vmatprep.subr.mxu0 0.0
        %1754 = vmatpush1.msra.mxu0 0.0
        %1755 = vmatprep.subr.mxu0 0.0
        %1756 = vmatpush1.msra.mxu0 0.0
        %1757 = vmatprep.subr.mxu0 0.0
        %1758 = vmatpush1.msra.mxu0 0.0
        %1759 = vmatprep.subr.mxu0 0.0
        %1760 = vmatpush1.msra.mxu0 0.0
        %1761 = vmatprep.subr.mxu0 0.0
        %1762 = vmatpush1.msra.mxu0 0.0
        %1763 = vmatprep.subr.mxu0 0.0
        %1764 = vmatpush1.msra.mxu0 0.0
        %1765 = vmatprep.subr.mxu0 0.0
        %1766 = vmatpush1.msra.mxu0 0.0
        %1767 = vmatprep.subr.mxu0 0.0
        %1768 = vmatpush1.msra.mxu0 0.0
        %1769 = vmatprep.subr.mxu0 0.0
        %1770 = vmatpush1.msra.mxu0 0.0
        %1771 = vmatprep.subr.mxu0 0.0
        %1772 = vmatpush1.msra.mxu0 0.0
        %1773 = vmatprep.subr.mxu0 0.0
        %1774 = vmatpush1.msra.mxu0 0.0
        %1775 = vmatprep.subr.mxu0 0.0
        %1776 = vmatpush1.msra.mxu0 0.0
        %1777 = vmatprep.subr.mxu0 0.0
        %1778 = vmatpush1.msra.mxu0 0.0
        %1779 = vmatprep.subr.mxu0 0.0
        %1780 = vmatpush1.msra.mxu0 0.0
        %1781 = vmatprep.subr.mxu0 0.0
        %1782 = vmatpush1.msra.mxu0 0.0
        %1783 = vmatprep.subr.mxu0 0.0
        %1784 = vmatpush1.msra.mxu0 0.0
        %1785 = vmatprep.subr.mxu0 0.0
        %1786 = vmatpush1.msra.mxu0 0.0
        %1787 = vmatprep.subr.mxu0 0.0
        %1788 = vmatpush1.msra.mxu0 0.0
        %1789 = vmatprep.subr.mxu0 0.0
        %1790 = vmatpush1.msra.mxu0 0.0
        %1791 = vmatprep.subr.mxu0 0.0
        %1792 = vmatpush1.msra.mxu0 0.0
        %1793 = vmatprep.subr.mxu0 0.0
        %1794 = vmatpush1.msra.mxu0 0.0
        %1795 = vmatprep.subr.mxu0 0.0
        %1796 = vmatpush1.msra.mxu0 0.0
        %1797 = vmatprep.subr.mxu0 0.0
        %1798 = vmatpush1.msra.mxu0 0.0
        %1799 = vmatprep.subr.mxu0 0.0
        %1800 = vmatpush1.msra.mxu0 0.0
        %1801 = vmatprep.subr.mxu0 0.0
        %1802 = vmatpush1.msra.mxu0 0.0
        %1803 = vmatprep.subr.mxu0 0.0
        %1804 = vmatpush1.msra.mxu0 0.0
        %1805 = vmatprep.subr.mxu0 0.0
        %1806 = vmatpush1.msra.mxu0 0.0
        %1807 = vmatprep.subr.mxu0 0.0
        %1808 = vmatpush1.msra.mxu0 0.0
        %1809 = vmatprep.subr.mxu0 0.0
        %1810 = vmatpush1.msra.mxu0 0.0
        %1811 = vmatprep.subr.mxu0 0.0
        %1812 = vmatpush1.msra.mxu0 0.0
        %1813 = vmatprep.subr.mxu0 0.0
        %1814 = vmatpush1.msra.mxu0 0.0
        %1815 = vmatprep.mubr.f32.mxu0 0.0
        %1816 = vmatmul.mubr.f32.gmra.mrb[0].mxu0 %v1749
        %v1817 = vpop.f32.mrb[0].mxu0
        %v1818 = vadd.f32 0.0, %v1817
        %v1819 = vpop.f32.mrb[0].mxu0
        %1820 = vdwg.mxu0
        %v1821 = vpack.c.bf16 %v1818, %v1818
        %v1823 = vrot.slane %v1821, 4
        %1824 = vrot.lane.b32.xlu0 %v1823, 8
        %v1825 = vpop.permute.xlu0 %1824
        %vm1827 = vcmask 130116
        %1828 = vst.msk [vmem:[#allocation2] sm:$0xf0] %vm1827, %v1825
        %1829 = vrot.lane.b32.xlu0 %v640, 112
        %v1830 = vpop.permute.xlu0 %1829
        %1831 = vrot.lane.b32.xlu0 %v714, 112
        %v1832 = vpop.permute.xlu0 %1831
        %v1833 = vsel %vm791, %v1830, 0
        %v1835 = vsel %vm791, %v1832, 0
        %1837 = vmatprep.subr.mxu0 0.0
        %1838 = vmatpush1.xpose.msra.mxu0 %v1835
        %1839 = vmatprep.subr.mxu0 0.0
        %1840 = vmatpush1.xpose.msra.mxu0 0.0
        %1841 = vmatprep.subr.mxu0 0.0
        %1842 = vmatpush1.xpose.msra.mxu0 0.0
        %1843 = vmatprep.subr.mxu0 0.0
        %1844 = vmatpush1.xpose.msra.mxu0 0.0
        %1845 = vmatprep.subr.mxu0 0.0
        %1846 = vmatpush1.xpose.msra.mxu0 0.0
        %1847 = vmatprep.subr.mxu0 0.0
        %1848 = vmatpush1.xpose.msra.mxu0 0.0
        %1849 = vmatprep.subr.mxu0 0.0
        %1850 = vmatpush1.xpose.msra.mxu0 0.0
        %1851 = vmatprep.subr.mxu0 0.0
        %1852 = vmatpush1.xpose.msra.mxu0 0.0
        %1853 = vmatprep.subr.mxu0 0.0
        %1854 = vmatpush1.xpose.msra.mxu0 0.0
        %1855 = vmatprep.subr.mxu0 0.0
        %1856 = vmatpush1.xpose.msra.mxu0 0.0
        %1857 = vmatprep.subr.mxu0 0.0
        %1858 = vmatpush1.xpose.msra.mxu0 0.0
        %1859 = vmatprep.subr.mxu0 0.0
        %1860 = vmatpush1.xpose.msra.mxu0 0.0
        %1861 = vmatprep.subr.mxu0 0.0
        %1862 = vmatpush1.xpose.msra.mxu0 0.0
        %1863 = vmatprep.subr.mxu0 0.0
        %1864 = vmatpush1.xpose.msra.mxu0 0.0
        %1865 = vmatprep.subr.mxu0 0.0
        %1866 = vmatpush1.xpose.msra.mxu0 0.0
        %1867 = vmatprep.subr.mxu0 0.0
        %1868 = vmatpush1.xpose.msra.mxu0 0.0
        %1869 = vmatprep.subr.mxu0 0.0
        %1870 = vmatpush1.xpose.msra.mxu0 0.0
        %1871 = vmatprep.subr.mxu0 0.0
        %1872 = vmatpush1.xpose.msra.mxu0 0.0
        %1873 = vmatprep.subr.mxu0 0.0
        %1874 = vmatpush1.xpose.msra.mxu0 0.0
        %1875 = vmatprep.subr.mxu0 0.0
        %1876 = vmatpush1.xpose.msra.mxu0 0.0
        %1877 = vmatprep.subr.mxu0 0.0
        %1878 = vmatpush1.xpose.msra.mxu0 0.0
        %1879 = vmatprep.subr.mxu0 0.0
        %1880 = vmatpush1.xpose.msra.mxu0 0.0
        %1881 = vmatprep.subr.mxu0 0.0
        %1882 = vmatpush1.xpose.msra.mxu0 0.0
        %1883 = vmatprep.subr.mxu0 0.0
        %1884 = vmatpush1.xpose.msra.mxu0 0.0
        %1885 = vmatprep.subr.mxu0 0.0
        %1886 = vmatpush1.xpose.msra.mxu0 0.0
        %1887 = vmatprep.subr.mxu0 0.0
        %1888 = vmatpush1.xpose.msra.mxu0 0.0
        %1889 = vmatprep.subr.mxu0 0.0
        %1890 = vmatpush1.xpose.msra.mxu0 0.0
        %1891 = vmatprep.subr.mxu0 0.0
        %1892 = vmatpush1.xpose.msra.mxu0 0.0
        %1893 = vmatprep.subr.mxu0 0.0
        %1894 = vmatpush1.xpose.msra.mxu0 0.0
        %1895 = vmatprep.subr.mxu0 0.0
        %1896 = vmatpush1.xpose.msra.mxu0 0.0
        %1897 = vmatprep.subr.mxu0 0.0
        %1898 = vmatpush1.xpose.msra.mxu0 0.0
        %1899 = vmatprep.subr.mxu0 0.0
        %1900 = vmatpush1.xpose.msra.mxu0 0.0
        %1901 = vmatprep.mubr.f32.mxu0 0.0
        %1902 = vmatmul.mubr.f32.gmra.mrb[0].mxu0 %v1833
        %v1903 = vpop.f32.mrb[0].mxu0
        %v1904 = vadd.f32 0.0, %v1903
        %v1905 = vpop.f32.mrb[0].mxu0
        %1906 = vdwg.mxu0
        %v1907 = vsel %vm791, %v1904, -inf
        %1908 = vmax.xlane.f32.xlu0 %v1907
        %v1909 = vpop.xlane.xlu0 %1908
        %v1910 = vsub.f32 %v1904, %v1909
        %v1911 = vmul.f32 %v1910, 1.442695
        %v1912 = vpow.pop %v1911
        %v1913 = vsel %vm791, %v1912, 0.0
        %1914 = vadd.xlane.f32.xlu0 %v1913
        %v1915 = vpop.xlane.xlu0 %1914
        %v1916 = vrcp.pop %v1915
        %v1917 = vmul.f32 %v1912, %v1916
        %v1918 = vpack.c.bf16 %v1917, %v1917
        %s1919 = scalar_lea.vmem %s561, 24 [#allocation15]
        %1920 = vst.msk [vmem:[%s1919] sm:$0xf] %vm880, %v1918
        %1921 = vrot.lane.b32.xlu0 %v788, 112
        %v1922 = vpop.permute.xlu0 %1921
        %v1925 = vsel %vm791, %v1917, 0
        %1927 = vmatprep.subr.mxu0 0.0
        %1928 = vmatpush1.msra.mxu0 %v1922
        %1929 = vmatprep.subr.mxu0 0.0
        %1930 = vmatpush1.msra.mxu0 0.0
        %1931 = vmatprep.subr.mxu0 0.0
        %1932 = vmatpush1.msra.mxu0 0.0
        %1933 = vmatprep.subr.mxu0 0.0
        %1934 = vmatpush1.msra.mxu0 0.0
        %1935 = vmatprep.subr.mxu0 0.0
        %1936 = vmatpush1.msra.mxu0 0.0
        %1937 = vmatprep.subr.mxu0 0.0
        %1938 = vmatpush1.msra.mxu0 0.0
        %1939 = vmatprep.subr.mxu0 0.0
        %1940 = vmatpush1.msra.mxu0 0.0
        %1941 = vmatprep.subr.mxu0 0.0
        %1942 = vmatpush1.msra.mxu0 0.0
        %1943 = vmatprep.subr.mxu0 0.0
        %1944 = vmatpush1.msra.mxu0 0.0
        %1945 = vmatprep.subr.mxu0 0.0
        %1946 = vmatpush1.msra.mxu0 0.0
        %1947 = vmatprep.subr.mxu0 0.0
        %1948 = vmatpush1.msra.mxu0 0.0
        %1949 = vmatprep.subr.mxu0 0.0
        %1950 = vmatpush1.msra.mxu0 0.0
        %1951 = vmatprep.subr.mxu0 0.0
        %1952 = vmatpush1.msra.mxu0 0.0
        %1953 = vmatprep.subr.mxu0 0.0
        %1954 = vmatpush1.msra.mxu0 0.0
        %1955 = vmatprep.subr.mxu0 0.0
        %1956 = vmatpush1.msra.mxu0 0.0
        %1957 = vmatprep.subr.mxu0 0.0
        %1958 = vmatpush1.msra.mxu0 0.0
        %1959 = vmatprep.subr.mxu0 0.0
        %1960 = vmatpush1.msra.mxu0 0.0
        %1961 = vmatprep.subr.mxu0 0.0
        %1962 = vmatpush1.msra.mxu0 0.0
        %1963 = vmatprep.subr.mxu0 0.0
        %1964 = vmatpush1.msra.mxu0 0.0
        %1965 = vmatprep.subr.mxu0 0.0
        %1966 = vmatpush1.msra.mxu0 0.0
        %1967 = vmatprep.subr.mxu0 0.0
        %1968 = vmatpush1.msra.mxu0 0.0
        %1969 = vmatprep.subr.mxu0 0.0
        %1970 = vmatpush1.msra.mxu0 0.0
        %1971 = vmatprep.subr.mxu0 0.0
        %1972 = vmatpush1.msra.mxu0 0.0
        %1973 = vmatprep.subr.mxu0 0.0
        %1974 = vmatpush1.msra.mxu0 0.0
        %1975 = vmatprep.subr.mxu0 0.0
        %1976 = vmatpush1.msra.mxu0 0.0
        %1977 = vmatprep.subr.mxu0 0.0
        %1978 = vmatpush1.msra.mxu0 0.0
        %1979 = vmatprep.subr.mxu0 0.0
        %1980 = vmatpush1.msra.mxu0 0.0
        %1981 = vmatprep.subr.mxu0 0.0
        %1982 = vmatpush1.msra.mxu0 0.0
        %1983 = vmatprep.subr.mxu0 0.0
        %1984 = vmatpush1.msra.mxu0 0.0
        %1985 = vmatprep.subr.mxu0 0.0
        %1986 = vmatpush1.msra.mxu0 0.0
        %1987 = vmatprep.subr.mxu0 0.0
        %1988 = vmatpush1.msra.mxu0 0.0
        %1989 = vmatprep.subr.mxu0 0.0
        %1990 = vmatpush1.msra.mxu0 0.0
        %1991 = vmatprep.mubr.f32.mxu0 0.0
        %1992 = vmatmul.mubr.f32.gmra.mrb[0].mxu0 %v1925
        %v1993 = vpop.f32.mrb[0].mxu0
        %v1994 = vadd.f32 0.0, %v1993
        %v1995 = vpop.f32.mrb[0].mxu0
        %1996 = vdwg.mxu0
        %v1997 = vpack.c.bf16 %v1994, %v1994
        %v1999 = vrot.slane %v1997, 4
        %2000 = vrot.lane.b32.xlu0 %v1999, 16
        %v2001 = vpop.permute.xlu0 %2000
        %vm2003 = vcmask 195716
        %2004 = vst.msk [vmem:[#allocation2] sm:$0xf0] %vm2003, %v2001
        %2005 = vrot.lane.b32.xlu0 %v640, 104
        %v2006 = vpop.permute.xlu0 %2005
        %2007 = vrot.lane.b32.xlu0 %v714, 104
        %v2008 = vpop.permute.xlu0 %2007
        %v2009 = vsel %vm791, %v2006, 0
        %v2011 = vsel %vm791, %v2008, 0
        %2013 = vmatprep.subr.mxu0 0.0
        %2014 = vmatpush1.xpose.msra.mxu0 %v2011
        %2015 = vmatprep.subr.mxu0 0.0
        %2016 = vmatpush1.xpose.msra.mxu0 0.0
        %2017 = vmatprep.subr.mxu0 0.0
        %2018 = vmatpush1.xpose.msra.mxu0 0.0
        %2019 = vmatprep.subr.mxu0 0.0
        %2020 = vmatpush1.xpose.msra.mxu0 0.0
        %2021 = vmatprep.subr.mxu0 0.0
        %2022 = vmatpush1.xpose.msra.mxu0 0.0
        %2023 = vmatprep.subr.mxu0 0.0
        %2024 = vmatpush1.xpose.msra.mxu0 0.0
        %2025 = vmatprep.subr.mxu0 0.0
        %2026 = vmatpush1.xpose.msra.mxu0 0.0
        %2027 = vmatprep.subr.mxu0 0.0
        %2028 = vmatpush1.xpose.msra.mxu0 0.0
        %2029 = vmatprep.subr.mxu0 0.0
        %2030 = vmatpush1.xpose.msra.mxu0 0.0
        %2031 = vmatprep.subr.mxu0 0.0
        %2032 = vmatpush1.xpose.msra.mxu0 0.0
        %2033 = vmatprep.subr.mxu0 0.0
        %2034 = vmatpush1.xpose.msra.mxu0 0.0
        %2035 = vmatprep.subr.mxu0 0.0
        %2036 = vmatpush1.xpose.msra.mxu0 0.0
        %2037 = vmatprep.subr.mxu0 0.0
        %2038 = vmatpush1.xpose.msra.mxu0 0.0
        %2039 = vmatprep.subr.mxu0 0.0
        %2040 = vmatpush1.xpose.msra.mxu0 0.0
        %2041 = vmatprep.subr.mxu0 0.0
        %2042 = vmatpush1.xpose.msra.mxu0 0.0
        %2043 = vmatprep.subr.mxu0 0.0
        %2044 = vmatpush1.xpose.msra.mxu0 0.0
        %2045 = vmatprep.subr.mxu0 0.0
        %2046 = vmatpush1.xpose.msra.mxu0 0.0
        %2047 = vmatprep.subr.mxu0 0.0
        %2048 = vmatpush1.xpose.msra.mxu0 0.0
        %2049 = vmatprep.subr.mxu0 0.0
        %2050 = vmatpush1.xpose.msra.mxu0 0.0
        %2051 = vmatprep.subr.mxu0 0.0
        %2052 = vmatpush1.xpose.msra.mxu0 0.0
        %2053 = vmatprep.subr.mxu0 0.0
        %2054 = vmatpush1.xpose.msra.mxu0 0.0
        %2055 = vmatprep.subr.mxu0 0.0
        %2056 = vmatpush1.xpose.msra.mxu0 0.0
        %2057 = vmatprep.subr.mxu0 0.0
        %2058 = vmatpush1.xpose.msra.mxu0 0.0
        %2059 = vmatprep.subr.mxu0 0.0
        %2060 = vmatpush1.xpose.msra.mxu0 0.0
        %2061 = vmatprep.subr.mxu0 0.0
        %2062 = vmatpush1.xpose.msra.mxu0 0.0
        %2063 = vmatprep.subr.mxu0 0.0
        %2064 = vmatpush1.xpose.msra.mxu0 0.0
        %2065 = vmatprep.subr.mxu0 0.0
        %2066 = vmatpush1.xpose.msra.mxu0 0.0
        %2067 = vmatprep.subr.mxu0 0.0
        %2068 = vmatpush1.xpose.msra.mxu0 0.0
        %2069 = vmatprep.subr.mxu0 0.0
        %2070 = vmatpush1.xpose.msra.mxu0 0.0
        %2071 = vmatprep.subr.mxu0 0.0
        %2072 = vmatpush1.xpose.msra.mxu0 0.0
        %2073 = vmatprep.subr.mxu0 0.0
        %2074 = vmatpush1.xpose.msra.mxu0 0.0
        %2075 = vmatprep.subr.mxu0 0.0
        %2076 = vmatpush1.xpose.msra.mxu0 0.0
        %2077 = vmatprep.mubr.f32.mxu0 0.0
        %2078 = vmatmul.mubr.f32.gmra.mrb[0].mxu0 %v2009
        %v2079 = vpop.f32.mrb[0].mxu0
        %v2080 = vadd.f32 0.0, %v2079
        %v2081 = vpop.f32.mrb[0].mxu0
        %2082 = vdwg.mxu0
        %v2083 = vsel %vm791, %v2080, -inf
        %2084 = vmax.xlane.f32.xlu0 %v2083
        %v2085 = vpop.xlane.xlu0 %2084
        %v2086 = vsub.f32 %v2080, %v2085
        %v2087 = vmul.f32 %v2086, 1.442695
        %v2088 = vpow.pop %v2087
        %v2089 = vsel %vm791, %v2088, 0.0
        %2090 = vadd.xlane.f32.xlu0 %v2089
        %v2091 = vpop.xlane.xlu0 %2090
        %v2092 = vrcp.pop %v2091
        %v2093 = vmul.f32 %v2088, %v2092
        %v2094 = vpack.c.bf16 %v2093, %v2093
        %s2095 = scalar_lea.vmem %s561, 28 [#allocation15]
        %2096 = vst.msk [vmem:[%s2095] sm:$0xf] %vm880, %v2094
        %2097 = vrot.lane.b32.xlu0 %v788, 104
        %v2098 = vpop.permute.xlu0 %2097
        %v2101 = vsel %vm791, %v2093, 0
        %2103 = vmatprep.subr.mxu0 0.0
        %2104 = vmatpush1.msra.mxu0 %v2098
        %2105 = vmatprep.subr.mxu0 0.0
        %2106 = vmatpush1.msra.mxu0 0.0
        %2107 = vmatprep.subr.mxu0 0.0
        %2108 = vmatpush1.msra.mxu0 0.0
        %2109 = vmatprep.subr.mxu0 0.0
        %2110 = vmatpush1.msra.mxu0 0.0
        %2111 = vmatprep.subr.mxu0 0.0
        %2112 = vmatpush1.msra.mxu0 0.0
        %2113 = vmatprep.subr.mxu0 0.0
        %2114 = vmatpush1.msra.mxu0 0.0
        %2115 = vmatprep.subr.mxu0 0.0
        %2116 = vmatpush1.msra.mxu0 0.0
        %2117 = vmatprep.subr.mxu0 0.0
        %2118 = vmatpush1.msra.mxu0 0.0
        %2119 = vmatprep.subr.mxu0 0.0
        %2120 = vmatpush1.msra.mxu0 0.0
        %2121 = vmatprep.subr.mxu0 0.0
        %2122 = vmatpush1.msra.mxu0 0.0
        %2123 = vmatprep.subr.mxu0 0.0
        %2124 = vmatpush1.msra.mxu0 0.0
        %2125 = vmatprep.subr.mxu0 0.0
        %2126 = vmatpush1.msra.mxu0 0.0
        %2127 = vmatprep.subr.mxu0 0.0
        %2128 = vmatpush1.msra.mxu0 0.0
        %2129 = vmatprep.subr.mxu0 0.0
        %2130 = vmatpush1.msra.mxu0 0.0
        %2131 = vmatprep.subr.mxu0 0.0
        %2132 = vmatpush1.msra.mxu0 0.0
        %2133 = vmatprep.subr.mxu0 0.0
        %2134 = vmatpush1.msra.mxu0 0.0
        %2135 = vmatprep.subr.mxu0 0.0
        %2136 = vmatpush1.msra.mxu0 0.0
        %2137 = vmatprep.subr.mxu0 0.0
        %2138 = vmatpush1.msra.mxu0 0.0
        %2139 = vmatprep.subr.mxu0 0.0
        %2140 = vmatpush1.msra.mxu0 0.0
        %2141 = vmatprep.subr.mxu0 0.0
        %2142 = vmatpush1.msra.mxu0 0.0
        %2143 = vmatprep.subr.mxu0 0.0
        %2144 = vmatpush1.msra.mxu0 0.0
        %2145 = vmatprep.subr.mxu0 0.0
        %2146 = vmatpush1.msra.mxu0 0.0
        %2147 = vmatprep.subr.mxu0 0.0
        %2148 = vmatpush1.msra.mxu0 0.0
        %2149 = vmatprep.subr.mxu0 0.0
        %2150 = vmatpush1.msra.mxu0 0.0
        %2151 = vmatprep.subr.mxu0 0.0
        %2152 = vmatpush1.msra.mxu0 0.0
        %2153 = vmatprep.subr.mxu0 0.0
        %2154 = vmatpush1.msra.mxu0 0.0
        %2155 = vmatprep.subr.mxu0 0.0
        %2156 = vmatpush1.msra.mxu0 0.0
        %2157 = vmatprep.subr.mxu0 0.0
        %2158 = vmatpush1.msra.mxu0 0.0
        %2159 = vmatprep.subr.mxu0 0.0
        %2160 = vmatpush1.msra.mxu0 0.0
        %2161 = vmatprep.subr.mxu0 0.0
        %2162 = vmatpush1.msra.mxu0 0.0
        %2163 = vmatprep.subr.mxu0 0.0
        %2164 = vmatpush1.msra.mxu0 0.0
        %2165 = vmatprep.subr.mxu0 0.0
        %2166 = vmatpush1.msra.mxu0 0.0
        %2167 = vmatprep.mubr.f32.mxu0 0.0
        %2168 = vmatmul.mubr.f32.gmra.mrb[0].mxu0 %v2101
        %v2169 = vpop.f32.mrb[0].mxu0
        %v2170 = vadd.f32 0.0, %v2169
        %v2171 = vpop.f32.mrb[0].mxu0
        %2172 = vdwg.mxu0
        %v2173 = vpack.c.bf16 %v2170, %v2170
        %v2175 = vrot.slane %v2173, 4
        %2176 = vrot.lane.b32.xlu0 %v2175, 24
        %v2177 = vpop.permute.xlu0 %2176
        %vm2179 = vcmask 261316
        %2180 = vst.msk [vmem:[#allocation2] sm:$0xf0] %vm2179, %v2177
        %v2181 = vld [vmem:[#allocation2] sm:$0xff]
        %v2182 = vld [vmem:[%s9] sm:$0xf]
        %v2183 = vld [vmem:[%s9 + $0x4] sm:$0xf]
        %v2184 = vld [vmem:[%s9 + $0x8] sm:$0xf]
        %v2185 = vld [vmem:[%s9 + $0xc] sm:$0xf]
        %v2186 = vld [vmem:[%s10] sm:$0x1]
        %v2188 = vlaneseq
        %v2189 = vshrl.u32 %v2188, 7
        %v2190 = vsub.s32 0, %v2189
        %v2191 = vrot.slane %v2186, %v2190
        %v2197 = vunpack.c.l.b16 %v2182
        %v2198 = vunpack.c.l.b16 %v2183
        %v2199 = vunpack.c.l.b16 %v2184
        %v2200 = vunpack.c.l.b16 %v2185
        %v2201 = vpack.c.b16 %v2198, %v2197
        %v2202 = vpack.c.b16 %v2200, %v2199
        %v2206 = vsel %vm598, %v2181, 0
        %2208 = vmatprep.subr.bf16.mxu0 0
        %2209 = vmatpush1.bf16.msra.mxu0 %v2201
        %2210 = vmatprep.subr.bf16.mxu0 0
        %2211 = vmatpush1.bf16.msra.mxu0 %v2202
        %2212 = vmatprep.subr.bf16.mxu0 0
        %2213 = vmatpush1.bf16.msra.mxu0 0
        %2214 = vmatprep.subr.bf16.mxu0 0
        %2215 = vmatpush1.bf16.msra.mxu0 0
        %2216 = vmatprep.subr.bf16.mxu0 0
        %2217 = vmatpush1.bf16.msra.mxu0 0
        %2218 = vmatprep.subr.bf16.mxu0 0
        %2219 = vmatpush1.bf16.msra.mxu0 0
        %2220 = vmatprep.subr.bf16.mxu0 0
        %2221 = vmatpush1.bf16.msra.mxu0 0
        %2222 = vmatprep.subr.bf16.mxu0 0
        %2223 = vmatpush1.bf16.msra.mxu0 0
        %2224 = vmatprep.subr.bf16.mxu0 0
        %2225 = vmatpush1.bf16.msra.mxu0 0
        %2226 = vmatprep.subr.bf16.mxu0 0
        %2227 = vmatpush1.bf16.msra.mxu0 0
        %2228 = vmatprep.subr.bf16.mxu0 0
        %2229 = vmatpush1.bf16.msra.mxu0 0
        %2230 = vmatprep.subr.bf16.mxu0 0
        %2231 = vmatpush1.bf16.msra.mxu0 0
        %2232 = vmatprep.subr.bf16.mxu0 0
        %2233 = vmatpush1.bf16.msra.mxu0 0
        %2234 = vmatprep.subr.bf16.mxu0 0
        %2235 = vmatpush1.bf16.msra.mxu0 0
        %2236 = vmatprep.subr.bf16.mxu0 0
        %2237 = vmatpush1.bf16.msra.mxu0 0
        %2238 = vmatprep.subr.bf16.mxu0 0
        %2239 = vmatpush1.bf16.msra.mxu0 0
        %2240 = vmatprep.mubr.bf16.mxu0 0
        %2241 = vmatmul.mubr.bf16.gmra.mrb[0].mxu0 %v2206
        %v2242 = vpop.f32.mrb[0].mxu0
        %v2243 = vadd.f32 %v2191, %v2242
        %v2244 = vpop.f32.mrb[0].mxu0
        %v2245 = vpop.f32.mrb[0].mxu0
        %v2246 = vadd.f32 %v2191, %v2245
        %v2247 = vpop.f32.mrb[0].mxu0
        %2248 = vdwg.mxu0
        %2249 = vst.msk [vmem:[%s554] sm:$0xff] %vm598, %v2243
        %2250 = vst.msk [vmem:[%s554 + $0x8] sm:$0xff] %vm598, %v2246
        %s2251 = sand.u32 %s292, 1
        %s2252 = scalar_lea.sflag [#allocation5], %s2251
        %s2253 = sand.u32 %s292, 1
        %s2254 = smul.addr %s2253, 16
        %s2255 = scalar_lea.vmem [#allocation14], %s2254
        %s2256 = sand.u32 %s318, 1
        %s2257 = scalar_lea.sflag [#allocation16], %s2256
        %s2258 = sand.u32 %s318, 1
        %s2259 = smul.addr %s2258, 32
        %s2260 = scalar_lea.vmem [#allocation15], %s2259
        // Predicated region
        $region89: #{tpu_custom_call.1} parent=63 // pred_check
          %p2261 = pneg %p302
        $region90: #{tpu_custom_call.1} parent=63 // pred_check_branch
          %2263 = sbr.rel (%p2261) target = $region92
        $region91: #{tpu_custom_call.1} parent=63 // pred_region
          %s2264 = smul.u32 2, %s38
          %s2266 = ssub.s32 256, 256
          %2267 = vsyncadd %s2252, %s2266
          %s2268 = smul.addr %s2264, 128
          %s2269 = scalar_lea.hbm %s11, %s2268
          %s2270 = sshll.u32 %s2255, 4
          %s2271 = int_to_ptr.vmem [resolvable:$true] %s2270
          %2276 = dma.vmem_to_hbm [thread:$0]  %s2271, 256, %s2269, %s2252, 128, 128, 8
        $region92: #{tpu_custom_call.1} parent=63 // pred_fallthru
          _
        // Predicated region
        $region93: #{tpu_custom_call.1} parent=63 // pred_check
          %p2277 = pneg %p328
        $region94: #{tpu_custom_call.1} parent=63 // pred_check_branch
          %2279 = sbr.rel (%p2277) target = $region96
        $region95: #{tpu_custom_call.1} parent=63 // pred_region
          %s2280 = smul.u32 2, %s38
          %s2282 = ssub.s32 512, 512
          %2283 = vsyncadd %s2257, %s2282
          %s2284 = smul.addr %s2280, 4
          %s2285 = smul.addr %s2284, 64
          %s2286 = scalar_lea.hbm %s12, %s2285
          %s2287 = sshll.u32 %s2260, 4
          %s2288 = int_to_ptr.vmem [resolvable:$true] %s2287
          %2293 = dma.vmem_to_hbm [thread:$0]  %s2288, 512, %s2286, %s2257, 64, 64, 4
        $region96: #{tpu_custom_call.1} parent=63 // pred_fallthru
          _
      $region64: #{tpu_custom_call.1} parent=5 // pred_fallthru
        _
      %p2294 = scmp.le.s32.totalorder 2, %s33
      // Predicated region
      $region97: #{tpu_custom_call.1} parent=5 // pred_check
        %p2295 = pneg %p2294
      $region98: #{tpu_custom_call.1} parent=5 // pred_check_branch
        %2297 = sbr.rel (%p2295) target = $region100
      $region99: #{tpu_custom_call.1} parent=5 // pred_region
        %s2298 = ssub.s32 %s33, 2
        // Predicated region
        $region101: #{tpu_custom_call.1} parent=99 // pred_check
          %p2299 = pneg %p308
        $region102: #{tpu_custom_call.1} parent=99 // pred_check_branch
          %2301 = sbr.rel (%p2299) target = $region104
        $region103: #{tpu_custom_call.1} parent=99 // pred_region
          %s2302 = sand.u32 %s293, 1
          %s2303 = scalar_lea.sflag [#allocation5], %s2302
          %s2304 = sand.u32 %s293, 1
          %s2305 = smul.addr %s2304, 16
          %s2306 = scalar_lea.vmem [#allocation14], %s2305
          %2307 = dma.done %s2303, 256
        $region104: #{tpu_custom_call.1} parent=99 // pred_fallthru
          _
        // Predicated region
        $region105: #{tpu_custom_call.1} parent=99 // pred_check
          %p2308 = pneg %p334
        $region106: #{tpu_custom_call.1} parent=99 // pred_check_branch
          %2310 = sbr.rel (%p2308) target = $region108
        $region107: #{tpu_custom_call.1} parent=99 // pred_region
          %s2311 = sand.u32 %s319, 1
          %s2312 = scalar_lea.sflag [#allocation16], %s2311
          %s2313 = sand.u32 %s319, 1
          %s2314 = smul.addr %s2313, 32
          %s2315 = scalar_lea.vmem [#allocation15], %s2314
          %2316 = dma.done %s2312, 512
        $region108: #{tpu_custom_call.1} parent=99 // pred_fallthru
          _
      $region100: #{tpu_custom_call.1} parent=5 // pred_fallthru
        _
    $region6: #{tpu_custom_call.1} parent=1 // loop_footer
      %s37 = sadd.s32 1, %s33
    $region7: #{tpu_custom_call.1} parent=1 // loop_footer_branch
      %32 = sbr.rel target = $region3
    $region8: #{tpu_custom_call.1} parent=1 // loop_exit
      _
    %2317 = vsyncpa [#allocation4], 1
    %s2318 = scalar_lea.sflag [#allocation4], 1
    %2319 = vsyncpa %s2318, 1
    %2320 = vsyncpa [#allocation7], 1
    %s2321 = scalar_lea.sflag [#allocation7], 1
    %2322 = vsyncpa %s2321, 1
    %2323 = vsyncpa [#allocation10], 1
    %2324 = vsyncpa [#allocation13], 1
    %2325 = vsyncpa [#allocation5], 1
    %s2326 = scalar_lea.sflag [#allocation5], 1
    %2327 = vsyncpa %s2326, 1
    %2328 = vsyncpa [#allocation16], 1
    %s2329 = scalar_lea.sflag [#allocation16], 1
    %2330 = vsyncpa %s2329, 1

</llo_original>
